<compile_context>
chip_gen: v6e
topology: v6e:2x2x1
jax: 0.10.0
libtpu: 0.0.40
codegen_flags: <defaults>
</compile_context>

<pallas_src>
import numpy as np
import jax
import jax.numpy as jnp
from jax.experimental import pallas as pl
from jax.experimental.pallas import tpu as pltpu

N_NODES = 248     # graph nodes == encoder input width == decoder output width
H_ENC = 180
LATENT = 80
H_DEC = 180
BN_EPS = 1e-5

# Lane-padded (multiple-of-128) sizes.
N_PAD = 256       # 248 -> 256
H_PAD = 256       # 180 -> 256
L_PAD = 128       # 80  -> 128


def _round_up(x, m):
    return (x + m - 1) // m * m


def _pad2d(a, shape):
    a = np.asarray(a, dtype=np.float32)
    out = np.zeros(shape, dtype=np.float32)
    out[: a.shape[0], : a.shape[1]] = a
    return out


# -----------------------------------------------------------------------------
# Kernel: one batch tile (TB, N_PAD) -> latent (TB, L_PAD), output (TB, N_PAD).
# Weight matrices are bf16, lane-dense, zero-padded, scalar-folded on the host.
# Biases are f32 rows.  All dots run bf16 x bf16 -> f32 accumulate on the MXU.
# -----------------------------------------------------------------------------
def autoencoder_kernel(x_ref, a_enc_ref, bg_enc_ref, w2_ref, b2_ref, w3_ref,
                       b3_ref, w4_ref, b4_ref, w5_ref, b5_ref, a_dec_ref,
                       bg_dec_ref, lat_ref, out_ref):
    x = x_ref[...]                                            # (TB, N_PAD) bf16

    # Encoder GCNConv(1->1): (x @ (gcn_w * A_hat^T)) + gcn_b, then Tanh.
    y = jnp.dot(x, a_enc_ref[...], preferred_element_type=jnp.float32)
    y = jnp.tanh(y + bg_enc_ref[...])                         # f32 tanh
    # dp_1: identity (eval).  BatchNorm1d(1) folded into W2'/b2' on host.

    # Linear(248->180) + Tanh (BN pre-folded).
    h = jnp.dot(y.astype(jnp.bfloat16), w2_ref[...],
                preferred_element_type=jnp.float32) + b2_ref[...]
    h = jnp.tanh(h)
    # dp_2: identity (eval).

    # Linear(180->80): latent (kept / returned in f32).
    lat = jnp.dot(h.astype(jnp.bfloat16), w3_ref[...],
                  preferred_element_type=jnp.float32) + b3_ref[...]
    lat_ref[...] = lat

    # Decoder Linear(80->180) + Tanh.
    d1 = jnp.dot(lat.astype(jnp.bfloat16), w4_ref[...],
                 preferred_element_type=jnp.float32) + b4_ref[...]
    d1 = jnp.tanh(d1)
    # dp_1 (decoder): identity (eval).

    # Decoder Linear(180->248) + Tanh.
    d2 = jnp.dot(d1.astype(jnp.bfloat16), w5_ref[...],
                 preferred_element_type=jnp.float32) + b5_ref[...]
    d2 = jnp.tanh(d2)
    # dp_2 (decoder): identity (eval).

    # Decoder GCNConv(1->1): (d2 @ (gcn_w * A_hat^T)) + gcn_b.
    out_ref[...] = (jnp.dot(d2.astype(jnp.bfloat16), a_dec_ref[...],
                            preferred_element_type=jnp.float32)
                    + bg_dec_ref[...])


# -----------------------------------------------------------------------------
# Host-side graph / parameter preparation.
# -----------------------------------------------------------------------------
def build_a_hat(edge_index, n_nodes):
    """Symmetric-normalized adjacency with self-loops (PyG GCNConv norm)."""
    src, dst = np.asarray(edge_index)
    a = np.zeros((n_nodes, n_nodes), dtype=np.float32)
    a[dst, src] = 1.0                       # message source -> target
    a = a + np.eye(n_nodes, dtype=np.float32)
    deg = a.sum(axis=1)
    dinv = 1.0 / np.sqrt(deg)
    return (dinv[:, None] * a * dinv[None, :]).astype(np.float32)


def make_params(key):
    k = jax.random.split(key, 12)
    return dict(
        enc_gcn_w=jax.random.normal(k[0], (), jnp.float32) * 0.5,
        enc_gcn_b=jax.random.normal(k[1], (), jnp.float32) * 0.1,
        enc_w2=jax.random.normal(k[2], (N_NODES, H_ENC), jnp.float32) * 0.05,
        enc_b2=jax.random.normal(k[3], (1, H_ENC), jnp.float32) * 0.1,
        enc_w3=jax.random.normal(k[4], (H_ENC, LATENT), jnp.float32) * 0.05,
        enc_b3=jax.random.normal(k[5], (1, LATENT), jnp.float32) * 0.1,
        dec_w1=jax.random.normal(k[6], (LATENT, H_DEC), jnp.float32) * 0.05,
        dec_b1=jax.random.normal(k[7], (1, H_DEC), jnp.float32) * 0.1,
        dec_w2=jax.random.normal(k[8], (H_DEC, N_NODES), jnp.float32) * 0.05,
        dec_b2=jax.random.normal(k[9], (1, N_NODES), jnp.float32) * 0.1,
        dec_gcn_w=jax.random.normal(k[10], (), jnp.float32) * 0.5,
        dec_gcn_b=jax.random.normal(k[11], (), jnp.float32) * 0.1,
        # BatchNorm1d(1) affine params / running stats (eval mode)
        bn_gamma=jnp.float32(1.1), bn_beta=jnp.float32(-0.05),
        bn_mean=jnp.float32(0.02), bn_var=jnp.float32(0.9),
    )


def prepare_device_params(a_hat, params):
    """Fold scalars, pad lane-dense, cast matmul weights to bf16.  Call once."""
    ah_t = np.asarray(a_hat, np.float32).T                  # agg = x @ A_hat^T

    # --- encoder ---
    gw_e = float(params["enc_gcn_w"]); gb_e = float(params["enc_gcn_b"])
    a_enc = _pad2d(gw_e * ah_t, (N_PAD, N_PAD))
    bg_enc = _pad2d(np.full((1, N_NODES), gb_e, np.float32), (1, N_PAD))

    # Fold eval-mode BatchNorm1d(1) (scalar affine) into Linear(248->180).
    bn_s = float(params["bn_gamma"]) / np.sqrt(float(params["bn_var"]) + BN_EPS)
    bn_t = float(params["bn_beta"]) - float(params["bn_mean"]) * bn_s
    w2 = np.asarray(params["enc_w2"], np.float32)
    b2 = np.asarray(params["enc_b2"], np.float32)
    w2f = bn_s * w2
    b2f = b2 + bn_t * w2.sum(axis=0, keepdims=True)

    mats = dict(
        a_enc=a_enc,
        w2=_pad2d(w2f, (N_PAD, H_PAD)),
        w3=_pad2d(params["enc_w3"], (H_PAD, L_PAD)),
        w4=_pad2d(params["dec_w1"], (L_PAD, H_PAD)),
        w5=_pad2d(params["dec_w2"], (H_PAD, N_PAD)),
        a_dec=_pad2d(float(params["dec_gcn_w"]) * ah_t, (N_PAD, N_PAD)),
    )
    vecs = dict(
        bg_enc=bg_enc,
        b2=_pad2d(b2f, (1, H_PAD)),
        b3=_pad2d(params["enc_b3"], (1, L_PAD)),
        b4=_pad2d(params["dec_b1"], (1, H_PAD)),
        b5=_pad2d(params["dec_b2"], (1, N_PAD)),
        bg_dec=_pad2d(np.full((1, N_NODES), float(params["dec_gcn_b"]),
                              np.float32), (1, N_PAD)),
    )
    dp = {k: jnp.asarray(v, jnp.bfloat16) for k, v in mats.items()}
    dp.update({k: jnp.asarray(v, jnp.float32) for k, v in vecs.items()})
    return dp


def _choose_batch_tiling(B):
    """>=2 grid steps (v7x dual-TC), TB<=256, minimal batch-padding waste."""
    n_tiles = max(2, pl.cdiv(B, 256))
    TB = _round_up(pl.cdiv(B, n_tiles), 8)
    B_pad = n_tiles * TB
    return TB, B_pad


# -----------------------------------------------------------------------------
# Forward wrapper.
# -----------------------------------------------------------------------------
def autoencoder_forward(x, dp):
    """x: (B, 1, 248) -> {'x_input', 'x_latent' (B,1,80), 'x_output' (B,1,248)}"""
    B = x.shape[0]
    TB, B_pad = _choose_batch_tiling(B)

    # Single fused host op: reshape + cast to bf16 + lane/batch pad.
    x2d = x.reshape(B, N_NODES).astype(jnp.bfloat16)
    xp = jnp.pad(x2d, ((0, B_pad - B), (0, N_PAD - N_NODES)))

    const = lambda i: (0, 0)
    batch = lambda i: (i, 0)

    # Advisory cost estimate (real, unpadded op counts; bf16 weight bytes).
    flops = int(2 * B * (2 * N_NODES * N_NODES + N_NODES * H_ENC
                         + H_ENC * LATENT + LATENT * H_DEC + H_DEC * N_NODES))
    transc = int(B * (N_NODES + H_ENC + H_DEC + N_NODES))
    w_bytes = (2 * (2 * N_PAD * N_PAD + N_PAD * H_PAD + H_PAD * L_PAD
                    + L_PAD * H_PAD + H_PAD * N_PAD)          # bf16 matrices
               + 4 * (2 * N_PAD + 2 * H_PAD + L_PAD + N_PAD))  # f32 bias rows
    bytes_accessed = int(2 * B_pad * N_PAD                     # bf16 input
                         + 4 * B_pad * (L_PAD + N_PAD)         # f32 outputs
                         + w_bytes)

    lat_p, out_p = pl.pallas_call(
        autoencoder_kernel,
        out_shape=(jax.ShapeDtypeStruct((B_pad, L_PAD), jnp.float32),
                   jax.ShapeDtypeStruct((B_pad, N_PAD), jnp.float32)),
        grid_spec=pltpu.PrefetchScalarGridSpec(
            num_scalar_prefetch=0,
            grid=(B_pad // TB,),
            in_specs=[
                pl.BlockSpec((TB, N_PAD), batch),     # x tile (bf16)
                pl.BlockSpec((N_PAD, N_PAD), const),  # A_enc' (gcn_w folded, bf16)
                pl.BlockSpec((1, N_PAD), const),      # encoder GCN bias row
                pl.BlockSpec((N_PAD, H_PAD), const),  # W2' (BN folded, bf16)
                pl.BlockSpec((1, H_PAD), const),      # b2'
                pl.BlockSpec((H_PAD, L_PAD), const),  # W3 (bf16)
                pl.BlockSpec((1, L_PAD), const),      # b3
                pl.BlockSpec((L_PAD, H_PAD), const),  # W4 (decoder, bf16)
                pl.BlockSpec((1, H_PAD), const),      # b4
                pl.BlockSpec((H_PAD, N_PAD), const),  # W5 (bf16)
                pl.BlockSpec((1, N_PAD), const),      # b5
                pl.BlockSpec((N_PAD, N_PAD), const),  # A_dec' (gcn_w folded, bf16)
                pl.BlockSpec((1, N_PAD), const),      # decoder GCN bias row
            ],
            out_specs=(pl.BlockSpec((TB, L_PAD), batch),
                       pl.BlockSpec((TB, N_PAD), batch)),
        ),
        compiler_params=pltpu.CompilerParams(
            dimension_semantics=("parallel",)),
        cost_estimate=pl.CostEstimate(flops=flops, transcendentals=transc,
                                      bytes_accessed=bytes_accessed),
    )(xp, dp["a_enc"], dp["bg_enc"], dp["w2"], dp["b2"], dp["w3"], dp["b3"],
      dp["w4"], dp["b4"], dp["w5"], dp["b5"], dp["a_dec"], dp["bg_dec"])

    x_latent = lat_p[:B, :LATENT].reshape(B, 1, LATENT)
    x_output = out_p[:B, :N_NODES].reshape(B, 1, N_NODES)
    return {"x_input": x, "x_latent": x_latent, "x_output": x_output}


# -----------------------------------------------------------------------------
# Pure-JAX reference (unpadded, f32, no folding) of the same eval-mode forward.
# -----------------------------------------------------------------------------
def reference_forward(x, a_hat, params):
    B = x.shape[0]
    ah_t = jnp.asarray(a_hat).T
    x2d = x.reshape(B, N_NODES).astype(jnp.float32)
    # encoder
    y = x2d @ ah_t * params["enc_gcn_w"] + params["enc_gcn_b"]
    y = jnp.tanh(y)
    bn_s = params["bn_gamma"] / jnp.sqrt(params["bn_var"] + BN_EPS)
    bn_t = params["bn_beta"] - params["bn_mean"] * bn_s
    y = y * bn_s + bn_t
    h = jnp.tanh(y @ params["enc_w2"] + params["enc_b2"])
    lat = h @ params["enc_w3"] + params["enc_b3"]
    # decoder
    d1 = jnp.tanh(lat @ params["dec_w1"] + params["dec_b1"])
    d2 = jnp.tanh(d1 @ params["dec_w2"] + params["dec_b2"])
    out = d2 @ ah_t * params["dec_gcn_w"] + params["dec_gcn_b"]
    return lat.reshape(B, 1, LATENT), out.reshape(B, 1, N_NODES)


if __name__ == "__main__":
    key = jax.random.PRNGKey(0)
    k_x, k_p = jax.random.split(key)

    # Deterministic edge_index: bidirectional ring over the 248 graph nodes.
    src = np.arange(N_NODES)
    dst = (np.arange(N_NODES) + 1) % N_NODES
    edge_index = np.stack([np.concatenate([src, dst]),
                           np.concatenate([dst, src])])
    a_hat = build_a_hat(edge_index, N_NODES)

    B = 8
    x = jax.random.normal(k_x, (B, 1, N_NODES), jnp.float32)
    params = make_params(k_p)

    # One-time host prep: fold scalars, pad lane-dense, cast to bf16, cache.
    dp = prepare_device_params(a_hat, params)

    out = autoencoder_forward(x, dp)
    jax.block_until_ready(out["x_output"])

    ref_lat, ref_out = reference_forward(x, a_hat, params)
    # bf16 MXU inputs (f32 accumulate) -> relaxed tolerance vs the f32 reference.
    np.testing.assert_allclose(np.asarray(out["x_latent"]), np.asarray(ref_lat),
                               rtol=5e-2, atol=5e-2)
    np.testing.assert_allclose(np.asarray(out["x_output"]), np.asarray(ref_out),
                               rtol=5e-2, atol=5e-2)
    assert out["x_latent"].shape == (B, 1, LATENT)
    assert out["x_output"].shape == (B, 1, N_NODES)
    print("KERNEL_OK")
</pallas_src>

<mosaic_0001>
module attributes {stable_mosaic.version = 11 : i64} {
  func.func @autoencoder_kernel(%arg0: i32, %arg1: memref<8x256xbf16, #tpu.memory_space<vmem>>, %arg2: memref<256x256xbf16, #tpu.memory_space<vmem>>, %arg3: memref<1x256xf32, #tpu.memory_space<vmem>>, %arg4: memref<256x256xbf16, #tpu.memory_space<vmem>>, %arg5: memref<1x256xf32, #tpu.memory_space<vmem>>, %arg6: memref<256x128xbf16, #tpu.memory_space<vmem>>, %arg7: memref<1x128xf32, #tpu.memory_space<vmem>>, %arg8: memref<128x256xbf16, #tpu.memory_space<vmem>>, %arg9: memref<1x256xf32, #tpu.memory_space<vmem>>, %arg10: memref<256x256xbf16, #tpu.memory_space<vmem>>, %arg11: memref<1x256xf32, #tpu.memory_space<vmem>>, %arg12: memref<256x256xbf16, #tpu.memory_space<vmem>>, %arg13: memref<1x256xf32, #tpu.memory_space<vmem>>, %arg14: memref<8x128xf32, #tpu.memory_space<vmem>>, %arg15: memref<8x256xf32, #tpu.memory_space<vmem>>) attributes {dimension_semantics = [#tpu.dimension_semantics<parallel>], iteration_bounds = array<i64: 2>, scalar_prefetch = 0 : i64, scratch_operands = 0 : i64, tpu.core_type = #tpu.core_type<tc>, window_params = [{transform_indices = @transform_0, window_bounds = array<i64: 8, 256>}, {pipeline_mode = #tpu.pipeline_mode<synchronous>, transform_indices = @transform_1, window_bounds = array<i64: 256, 256>}, {pipeline_mode = #tpu.pipeline_mode<synchronous>, transform_indices = @transform_2, window_bounds = array<i64: 1, 256>}, {pipeline_mode = #tpu.pipeline_mode<synchronous>, transform_indices = @transform_3, window_bounds = array<i64: 256, 256>}, {pipeline_mode = #tpu.pipeline_mode<synchronous>, transform_indices = @transform_4, window_bounds = array<i64: 1, 256>}, {pipeline_mode = #tpu.pipeline_mode<synchronous>, transform_indices = @transform_5, window_bounds = array<i64: 256, 128>}, {pipeline_mode = #tpu.pipeline_mode<synchronous>, transform_indices = @transform_6, window_bounds = array<i64: 1, 128>}, {pipeline_mode = #tpu.pipeline_mode<synchronous>, transform_indices = @transform_7, window_bounds = array<i64: 128, 256>}, {pipeline_mode = #tpu.pipeline_mode<synchronous>, transform_indices = @transform_8, window_bounds = array<i64: 1, 256>}, {pipeline_mode = #tpu.pipeline_mode<synchronous>, transform_indices = @transform_9, window_bounds = array<i64: 256, 256>}, {pipeline_mode = #tpu.pipeline_mode<synchronous>, transform_indices = @transform_10, window_bounds = array<i64: 1, 256>}, {pipeline_mode = #tpu.pipeline_mode<synchronous>, transform_indices = @transform_11, window_bounds = array<i64: 256, 256>}, {pipeline_mode = #tpu.pipeline_mode<synchronous>, transform_indices = @transform_12, window_bounds = array<i64: 1, 256>}, {transform_indices = @transform_13, window_bounds = array<i64: 8, 128>}, {transform_indices = @transform_14, window_bounds = array<i64: 8, 256>}]} {
    %c0 = arith.constant 0 : index
    %c0_0 = arith.constant 0 : index
    %0 = vector.load %arg1[%c0, %c0_0] : memref<8x256xbf16, #tpu.memory_space<vmem>>, vector<8x256xbf16>
    %c0_1 = arith.constant 0 : index
    %c0_2 = arith.constant 0 : index
    %1 = vector.load %arg2[%c0_1, %c0_2] : memref<256x256xbf16, #tpu.memory_space<vmem>>, vector<256x256xbf16>
    %cst = arith.constant dense<0.000000e+00> : vector<8x256xf32>
    %2 = tpu.matmul %0, %1, %cst {dimension_numbers = #tpu.dot_dimension_numbers<[1], [0], [0], [1], [0, 0, 1, 1], [], []>} : vector<8x256xbf16>, vector<256x256xbf16>, vector<8x256xf32> -> vector<8x256xf32>
    %c0_3 = arith.constant 0 : index
    %c0_4 = arith.constant 0 : index
    %3 = vector.load %arg3[%c0_3, %c0_4] : memref<1x256xf32, #tpu.memory_space<vmem>>, vector<1x256xf32>
    %4 = vector.broadcast %3 : vector<1x256xf32> to vector<8x256xf32>
    %5 = arith.addf %2, %4 : vector<8x256xf32>
    %6 = math.tanh %5 : vector<8x256xf32>
    %7 = arith.truncf %6 : vector<8x256xf32> to vector<8x256xbf16>
    %c0_5 = arith.constant 0 : index
    %c0_6 = arith.constant 0 : index
    %8 = vector.load %arg4[%c0_5, %c0_6] : memref<256x256xbf16, #tpu.memory_space<vmem>>, vector<256x256xbf16>
    %cst_7 = arith.constant dense<0.000000e+00> : vector<8x256xf32>
    %9 = tpu.matmul %7, %8, %cst_7 {dimension_numbers = #tpu.dot_dimension_numbers<[1], [0], [0], [1], [0, 0, 1, 1], [], []>} : vector<8x256xbf16>, vector<256x256xbf16>, vector<8x256xf32> -> vector<8x256xf32>
    %c0_8 = arith.constant 0 : index
    %c0_9 = arith.constant 0 : index
    %10 = vector.load %arg5[%c0_8, %c0_9] : memref<1x256xf32, #tpu.memory_space<vmem>>, vector<1x256xf32>
    %11 = vector.broadcast %10 : vector<1x256xf32> to vector<8x256xf32>
    %12 = arith.addf %9, %11 : vector<8x256xf32>
    %13 = math.tanh %12 : vector<8x256xf32>
    %14 = arith.truncf %13 : vector<8x256xf32> to vector<8x256xbf16>
    %c0_10 = arith.constant 0 : index
    %c0_11 = arith.constant 0 : index
    %15 = vector.load %arg6[%c0_10, %c0_11] : memref<256x128xbf16, #tpu.memory_space<vmem>>, vector<256x128xbf16>
    %cst_12 = arith.constant dense<0.000000e+00> : vector<8x128xf32>
    %16 = tpu.matmul %14, %15, %cst_12 {dimension_numbers = #tpu.dot_dimension_numbers<[1], [0], [0], [1], [0, 0, 1, 1], [], []>} : vector<8x256xbf16>, vector<256x128xbf16>, vector<8x128xf32> -> vector<8x128xf32>
    %c0_13 = arith.constant 0 : index
    %c0_14 = arith.constant 0 : index
    %17 = vector.load %arg7[%c0_13, %c0_14] : memref<1x128xf32, #tpu.memory_space<vmem>>, vector<1x128xf32>
    %18 = vector.broadcast %17 : vector<1x128xf32> to vector<8x128xf32>
    %19 = arith.addf %16, %18 : vector<8x128xf32>
    %c0_15 = arith.constant 0 : index
    %c0_16 = arith.constant 0 : index
    %20 = vector.load %arg14[%c0_15, %c0_16] : memref<8x128xf32, #tpu.memory_space<vmem>>, vector<8x128xf32>
    tpu.vector_store %arg14[%c0_15, %c0_16], %19 {strides = array<i32>} : memref<8x128xf32, #tpu.memory_space<vmem>>, vector<8x128xf32>,
    %21 = arith.truncf %19 : vector<8x128xf32> to vector<8x128xbf16>
    %c0_17 = arith.constant 0 : index
    %c0_18 = arith.constant 0 : index
    %22 = vector.load %arg8[%c0_17, %c0_18] : memref<128x256xbf16, #tpu.memory_space<vmem>>, vector<128x256xbf16>
    %cst_19 = arith.constant dense<0.000000e+00> : vector<8x256xf32>
    %23 = tpu.matmul %21, %22, %cst_19 {dimension_numbers = #tpu.dot_dimension_numbers<[1], [0], [0], [1], [0, 0, 1, 1], [], []>} : vector<8x128xbf16>, vector<128x256xbf16>, vector<8x256xf32> -> vector<8x256xf32>
    %c0_20 = arith.constant 0 : index
    %c0_21 = arith.constant 0 : index
    %24 = vector.load %arg9[%c0_20, %c0_21] : memref<1x256xf32, #tpu.memory_space<vmem>>, vector<1x256xf32>
    %25 = vector.broadcast %24 : vector<1x256xf32> to vector<8x256xf32>
    %26 = arith.addf %23, %25 : vector<8x256xf32>
    %27 = math.tanh %26 : vector<8x256xf32>
    %28 = arith.truncf %27 : vector<8x256xf32> to vector<8x256xbf16>
    %c0_22 = arith.constant 0 : index
    %c0_23 = arith.constant 0 : index
    %29 = vector.load %arg10[%c0_22, %c0_23] : memref<256x256xbf16, #tpu.memory_space<vmem>>, vector<256x256xbf16>
    %cst_24 = arith.constant dense<0.000000e+00> : vector<8x256xf32>
    %30 = tpu.matmul %28, %29, %cst_24 {dimension_numbers = #tpu.dot_dimension_numbers<[1], [0], [0], [1], [0, 0, 1, 1], [], []>} : vector<8x256xbf16>, vector<256x256xbf16>, vector<8x256xf32> -> vector<8x256xf32>
    %c0_25 = arith.constant 0 : index
    %c0_26 = arith.constant 0 : index
    %31 = vector.load %arg11[%c0_25, %c0_26] : memref<1x256xf32, #tpu.memory_space<vmem>>, vector<1x256xf32>
    %32 = vector.broadcast %31 : vector<1x256xf32> to vector<8x256xf32>
    %33 = arith.addf %30, %32 : vector<8x256xf32>
    %34 = math.tanh %33 : vector<8x256xf32>
    %35 = arith.truncf %34 : vector<8x256xf32> to vector<8x256xbf16>
    %c0_27 = arith.constant 0 : index
    %c0_28 = arith.constant 0 : index
    %36 = vector.load %arg12[%c0_27, %c0_28] : memref<256x256xbf16, #tpu.memory_space<vmem>>, vector<256x256xbf16>
    %cst_29 = arith.constant dense<0.000000e+00> : vector<8x256xf32>
    %37 = tpu.matmul %35, %36, %cst_29 {dimension_numbers = #tpu.dot_dimension_numbers<[1], [0], [0], [1], [0, 0, 1, 1], [], []>} : vector<8x256xbf16>, vector<256x256xbf16>, vector<8x256xf32> -> vector<8x256xf32>
    %c0_30 = arith.constant 0 : index
    %c0_31 = arith.constant 0 : index
    %38 = vector.load %arg13[%c0_30, %c0_31] : memref<1x256xf32, #tpu.memory_space<vmem>>, vector<1x256xf32>
    %39 = vector.broadcast %38 : vector<1x256xf32> to vector<8x256xf32>
    %40 = arith.addf %37, %39 : vector<8x256xf32>
    %c0_32 = arith.constant 0 : index
    %c0_33 = arith.constant 0 : index
    %41 = vector.load %arg15[%c0_32, %c0_33] : memref<8x256xf32, #tpu.memory_space<vmem>>, vector<8x256xf32>
    tpu.vector_store %arg15[%c0_32, %c0_33], %40 {strides = array<i32>} : memref<8x256xf32, #tpu.memory_space<vmem>>, vector<8x256xf32>,
    return
  }
  func.func @transform_0(%arg0: i32) -> (i32, i32) {
    %c0_i32 = arith.constant 0 : i32
    %c0_i32_0 = arith.constant 0 : i32
    return %arg0, %c0_i32 : i32, i32
  }
  func.func @transform_1(%arg0: i32) -> (i32, i32) {
    %c0_i32 = arith.constant 0 : i32
    %c0_i32_0 = arith.constant 0 : i32
    %c0_i32_1 = arith.constant 0 : i32
    return %c0_i32, %c0_i32_0 : i32, i32
  }
  func.func @transform_2(%arg0: i32) -> (i32, i32) {
    %c0_i32 = arith.constant 0 : i32
    %c0_i32_0 = arith.constant 0 : i32
    %c0_i32_1 = arith.constant 0 : i32
    return %c0_i32, %c0_i32_0 : i32, i32
  }
  func.func @transform_3(%arg0: i32) -> (i32, i32) {
    %c0_i32 = arith.constant 0 : i32
    %c0_i32_0 = arith.constant 0 : i32
    %c0_i32_1 = arith.constant 0 : i32
    return %c0_i32, %c0_i32_0 : i32, i32
  }
  func.func @transform_4(%arg0: i32) -> (i32, i32) {
    %c0_i32 = arith.constant 0 : i32
    %c0_i32_0 = arith.constant 0 : i32
    %c0_i32_1 = arith.constant 0 : i32
    return %c0_i32, %c0_i32_0 : i32, i32
  }
  func.func @transform_5(%arg0: i32) -> (i32, i32) {
    %c0_i32 = arith.constant 0 : i32
    %c0_i32_0 = arith.constant 0 : i32
    %c0_i32_1 = arith.constant 0 : i32
    return %c0_i32, %c0_i32_0 : i32, i32
  }
  func.func @transform_6(%arg0: i32) -> (i32, i32) {
    %c0_i32 = arith.constant 0 : i32
    %c0_i32_0 = arith.constant 0 : i32
    %c0_i32_1 = arith.constant 0 : i32
    return %c0_i32, %c0_i32_0 : i32, i32
  }
  func.func @transform_7(%arg0: i32) -> (i32, i32) {
    %c0_i32 = arith.constant 0 : i32
    %c0_i32_0 = arith.constant 0 : i32
    %c0_i32_1 = arith.constant 0 : i32
    return %c0_i32, %c0_i32_0 : i32, i32
  }
  func.func @transform_8(%arg0: i32) -> (i32, i32) {
    %c0_i32 = arith.constant 0 : i32
    %c0_i32_0 = arith.constant 0 : i32
    %c0_i32_1 = arith.constant 0 : i32
    return %c0_i32, %c0_i32_0 : i32, i32
  }
  func.func @transform_9(%arg0: i32) -> (i32, i32) {
    %c0_i32 = arith.constant 0 : i32
    %c0_i32_0 = arith.constant 0 : i32
    %c0_i32_1 = arith.constant 0 : i32
    return %c0_i32, %c0_i32_0 : i32, i32
  }
  func.func @transform_10(%arg0: i32) -> (i32, i32) {
    %c0_i32 = arith.constant 0 : i32
    %c0_i32_0 = arith.constant 0 : i32
    %c0_i32_1 = arith.constant 0 : i32
    return %c0_i32, %c0_i32_0 : i32, i32
  }
  func.func @transform_11(%arg0: i32) -> (i32, i32) {
    %c0_i32 = arith.constant 0 : i32
    %c0_i32_0 = arith.constant 0 : i32
    %c0_i32_1 = arith.constant 0 : i32
    return %c0_i32, %c0_i32_0 : i32, i32
  }
  func.func @transform_12(%arg0: i32) -> (i32, i32) {
    %c0_i32 = arith.constant 0 : i32
    %c0_i32_0 = arith.constant 0 : i32
    %c0_i32_1 = arith.constant 0 : i32
    return %c0_i32, %c0_i32_0 : i32, i32
  }
  func.func @transform_13(%arg0: i32) -> (i32, i32) {
    %c0_i32 = arith.constant 0 : i32
    %c0_i32_0 = arith.constant 0 : i32
    return %arg0, %c0_i32 : i32, i32
  }
  func.func @transform_14(%arg0: i32) -> (i32, i32) {
    %c0_i32 = arith.constant 0 : i32
    %c0_i32_0 = arith.constant 0 : i32
    return %arg0, %c0_i32 : i32, i32
  }
}

</mosaic_0001>

<llo_original>
// kernel: tpu_custom_call.1
$region0: #{tpu_custom_call.1}
  #allocation0 [shape = 'u32[]', space=smem, size = 0x4, offset = 0x4, fixed_abs, tag = 'smem constant byte address 0x4 - core index']
  #allocation1 [shape = 'u32[144,128]{1,0:T(1,128)}', space=vmem, size = 0x12000, scoped, tag = 'internal scratch']
  %s0 = inlined_call_operand.hbm [shape: bf16[16,256], index: 0, kind: input, shape index: {}]
  %s1 = inlined_call_operand.hbm [shape: bf16[256,256], index: 1, kind: input, shape index: {}]
  %s2 = inlined_call_operand.vmem [shape: f32[1,256], index: 2, kind: input, shape index: {}]
  %s3 = inlined_call_operand.hbm [shape: bf16[256,256], index: 3, kind: input, shape index: {}]
  %s4 = inlined_call_operand.vmem [shape: f32[1,256], index: 4, kind: input, shape index: {}]
  %s5 = inlined_call_operand.hbm [shape: bf16[256,128], index: 5, kind: input, shape index: {}]
  %s6 = inlined_call_operand.hbm [shape: f32[1,128], index: 6, kind: input, shape index: {}]
  %s7 = inlined_call_operand.hbm [shape: bf16[128,256], index: 7, kind: input, shape index: {}]
  %s8 = inlined_call_operand.vmem [shape: f32[1,256], index: 8, kind: input, shape index: {}]
  %s9 = inlined_call_operand.hbm [shape: bf16[256,256], index: 9, kind: input, shape index: {}]
  %s10 = inlined_call_operand.vmem [shape: f32[1,256], index: 10, kind: input, shape index: {}]
  %s11 = inlined_call_operand.hbm [shape: bf16[256,256], index: 11, kind: input, shape index: {}]
  %s12 = inlined_call_operand.vmem [shape: f32[1,256], index: 12, kind: input, shape index: {}]
  %s13 = inlined_call_operand.hbm [shape: f32[16,128], index: 13, kind: output, shape index: {0}]
  %s14 = inlined_call_operand.hbm [shape: f32[16,256], index: 14, kind: output, shape index: {1}]
  %15 = xla_tuple %s13, %s14
  %s16 = sld [smem:[#allocation0]]
  $region125: #{tpu_custom_call.1} parent=0
    _
  %s18 = ssub.s32 1, %s16
  %s19 = scalar_select 0, %s18, %s16
  $region1: #{tpu_custom_call.1} parent=0
    #allocation2 [shape = 'u8[8192]{0}', space=vmem, size = 0x2000, scoped, tag = 'input window, operand 0']
    #allocation3 [shape = 's32[2]{0}', space=sflag, size = 0x8, scoped, tag = 'scoped memory for tpu_custom_call.1']
    #allocation4 [shape = 's32[2]{0}', space=sflag, size = 0x8, scoped, tag = 'scoped memory for tpu_custom_call.1']
    #allocation5 [shape = 'u8[131072]{0}', space=vmem, size = 0x20000, scoped, tag = 'input window, operand 1, single buffered']
    #allocation6 [shape = 's32[1]{0}', space=sflag, size = 0x4, scoped, tag = 'scoped memory for tpu_custom_call.1']
    #allocation7 [shape = 'u8[131072]{0}', space=vmem, size = 0x20000, scoped, tag = 'input window, operand 3, single buffered']
    #allocation8 [shape = 'u8[65536]{0}', space=vmem, size = 0x10000, scoped, tag = 'input window, operand 5, single buffered']
    #allocation9 [shape = 's32[1]{0}', space=sflag, size = 0x4, scoped, tag = 'scoped memory for tpu_custom_call.1']
    #allocation10 [shape = 'u8[512]{0}', space=vmem, size = 0x400, scoped, tag = 'input window, operand 6, single buffered']
    #allocation11 [shape = 'u8[65536]{0}', space=vmem, size = 0x10000, scoped, tag = 'input window, operand 7, single buffered']
    #allocation12 [shape = 's32[1]{0}', space=sflag, size = 0x4, scoped, tag = 'scoped memory for tpu_custom_call.1']
    #allocation13 [shape = 'u8[131072]{0}', space=vmem, size = 0x20000, scoped, tag = 'input window, operand 9, single buffered']
    #allocation14 [shape = 'u8[131072]{0}', space=vmem, size = 0x20000, scoped, tag = 'input window, operand 11, single buffered']
    #allocation15 [shape = 's32[1]{0}', space=sflag, size = 0x4, scoped, tag = 'scoped memory for tpu_custom_call.1']
    #allocation16 [shape = 'u8[8192]{0}', space=vmem, size = 0x2000, scoped, tag = 'output window, operand 0']
    #allocation17 [shape = 'u8[16384]{0}', space=vmem, size = 0x4000, scoped, tag = 'output window, operand 1']
    #allocation18 [shape = 's32[2]{0}', space=sflag, size = 0x8, scoped, tag = 'scoped memory for tpu_custom_call.1']
    %20 = vsyncpa [#allocation3], 0
    %s21 = scalar_lea.sflag [#allocation3], 1
    %22 = vsyncpa %s21, 0
    %23 = vsyncpa [#allocation6], 0
    %24 = vsyncpa [#allocation9], 0
    %25 = vsyncpa [#allocation12], 0
    %26 = vsyncpa [#allocation15], 0
    %27 = vsyncpa [#allocation4], 0
    %s28 = scalar_lea.sflag [#allocation4], 1
    %29 = vsyncpa %s28, 0
    %30 = vsyncpa [#allocation18], 0
    %s31 = scalar_lea.sflag [#allocation18], 1
    %32 = vsyncpa %s31, 0
    loop: start=0, step=1, limit=4
    $region2: #{tpu_custom_call.1} parent=1 // loop_pre_header
      _
    $region3: #{tpu_custom_call.1} parent=1 // loop_header
      %s34 = sphi 0, %s38
      %p35 = scmp.ge.s32.totalorder %s34, 4
      %s44 = sphi 0, %s46
      %s47 = sphi 0, %s44
      %s48 = sphi 0, %s47
      %s64 = sphi 0, %s48
      %s68 = sphi 0, %s68
      %s70 = sphi 0, %s68
      %s71 = sphi 0, %s70
      %s85 = sphi 0, %s71
      %s89 = sphi 0, %s89
      %s91 = sphi 0, %s89
      %s92 = sphi 0, %s91
      %s106 = sphi 0, %s92
      %s110 = sphi 0, %s110
      %s112 = sphi 0, %s110
      %s113 = sphi 0, %s112
      %s127 = sphi 0, %s113
      %s131 = sphi 0, %s131
      %s133 = sphi 0, %s131
      %s134 = sphi 0, %s133
      %s148 = sphi 0, %s134
      %s152 = sphi 0, %s152
      %s154 = sphi 0, %s152
      %s155 = sphi 0, %s154
      %s169 = sphi 0, %s155
      %s173 = sphi 0, %s173
      %s175 = sphi 0, %s173
      %s176 = sphi 0, %s175
      %s190 = sphi 0, %s176
      %s194 = sphi 0, %s194
      %s196 = sphi 0, %s194
      %s197 = sphi 0, %s196
      %s211 = sphi 0, %s197
      %s215 = sphi 0, %s215
      %s217 = sphi 0, %s215
      %s218 = sphi 0, %s217
      %s232 = sphi 0, %s218
      %s236 = sphi 0, %s236
      %s238 = sphi 0, %s236
      %s239 = sphi 0, %s238
      %s253 = sphi 0, %s239
      %s257 = sphi 0, %s257
      %s259 = sphi 0, %s257
      %s260 = sphi 0, %s259
      %s274 = sphi 0, %s260
      %s278 = sphi 0, %s278
      %s280 = sphi 0, %s278
      %s281 = sphi 0, %s280
      %s295 = sphi 0, %s281
      %s299 = sphi 0, %s299
      %s301 = sphi 0, %s299
      %s302 = sphi 0, %s301
      %s316 = sphi 0, %s302
      %s322 = sphi 0, %s324
      %s325 = sphi 0, %s322
      %s326 = sphi 0, %s325
      %s342 = sphi 0, %s326
      %s348 = sphi 0, %s350
      %s351 = sphi 0, %s348
      %s352 = sphi 0, %s351
      %s368 = sphi 0, %s352
    $region4: #{tpu_custom_call.1} parent=1 // loop_header_branch
      %37 = sbr.rel (%p35) target = $region8
    $region5: #{tpu_custom_call.1} parent=1 // loop_body
      %s39 = ssub.s32 %s34, 1
      %s40 = ssub.s32 %s34, 2
      %s41 = sadd.s32 %s34, 1
      %s42 = ssub.s32 %s34, %s41
      %p43 = scmp.eq.s32.totalorder %s42, 0
      %s45 = sadd.s32 %s44, 1
      %s46 = scalar_select %p43, %s44, %s45
      %p49 = pneg %p43
      %p50 = scmp.eq.s32.totalorder %s34, 1
      %p51 = por %p49, %p50
      %p52 = scmp.ne.s32.totalorder %s44, %s47
      %p53 = scmp.eq.s32.totalorder %s34, 0
      %p54 = por %p52, %p53
      %p55 = scmp.ne.s32.totalorder %s44, %s47
      %p56 = scmp.eq.s32.totalorder %s39, 1
      %p57 = por %p55, %p56
      %p58 = scmp.ne.s32.totalorder %s47, %s48
      %p59 = scmp.eq.s32.totalorder %s39, 0
      %p60 = por %p58, %p59
      %p61 = scmp.ne.s32.totalorder %s47, %s48
      %p62 = scmp.eq.s32.totalorder %s40, 1
      %p63 = por %p61, %p62
      %p65 = scmp.ne.s32.totalorder %s48, %s64
      %p66 = scmp.eq.s32.totalorder %s40, 0
      %p67 = por %p65, %p66
      %s69 = sadd.s32 %s68, 1
      %p72 = scmp.eq.s32.totalorder %s34, 1
      %p73 = scmp.ne.s32.totalorder %s68, %s70
      %p74 = scmp.eq.s32.totalorder %s34, 0
      %p75 = por %p73, %p74
      %p76 = scmp.ne.s32.totalorder %s68, %s70
      %p77 = scmp.eq.s32.totalorder %s39, 1
      %p78 = por %p76, %p77
      %p79 = scmp.ne.s32.totalorder %s70, %s71
      %p80 = scmp.eq.s32.totalorder %s39, 0
      %p81 = por %p79, %p80
      %p82 = scmp.ne.s32.totalorder %s70, %s71
      %p83 = scmp.eq.s32.totalorder %s40, 1
      %p84 = por %p82, %p83
      %p86 = scmp.ne.s32.totalorder %s71, %s85
      %p87 = scmp.eq.s32.totalorder %s40, 0
      %p88 = por %p86, %p87
      %s90 = sadd.s32 %s89, 1
      %p93 = scmp.eq.s32.totalorder %s34, 1
      %p94 = scmp.ne.s32.totalorder %s89, %s91
      %p95 = scmp.eq.s32.totalorder %s34, 0
      %p96 = por %p94, %p95
      %p97 = scmp.ne.s32.totalorder %s89, %s91
      %p98 = scmp.eq.s32.totalorder %s39, 1
      %p99 = por %p97, %p98
      %p100 = scmp.ne.s32.totalorder %s91, %s92
      %p101 = scmp.eq.s32.totalorder %s39, 0
      %p102 = por %p100, %p101
      %p103 = scmp.ne.s32.totalorder %s91, %s92
      %p104 = scmp.eq.s32.totalorder %s40, 1
      %p105 = por %p103, %p104
      %p107 = scmp.ne.s32.totalorder %s92, %s106
      %p108 = scmp.eq.s32.totalorder %s40, 0
      %p109 = por %p107, %p108
      %s111 = sadd.s32 %s110, 1
      %p114 = scmp.eq.s32.totalorder %s34, 1
      %p115 = scmp.ne.s32.totalorder %s110, %s112
      %p116 = scmp.eq.s32.totalorder %s34, 0
      %p117 = por %p115, %p116
      %p118 = scmp.ne.s32.totalorder %s110, %s112
      %p119 = scmp.eq.s32.totalorder %s39, 1
      %p120 = por %p118, %p119
      %p121 = scmp.ne.s32.totalorder %s112, %s113
      %p122 = scmp.eq.s32.totalorder %s39, 0
      %p123 = por %p121, %p122
      %p124 = scmp.ne.s32.totalorder %s112, %s113
      %p125 = scmp.eq.s32.totalorder %s40, 1
      %p126 = por %p124, %p125
      %p128 = scmp.ne.s32.totalorder %s113, %s127
      %p129 = scmp.eq.s32.totalorder %s40, 0
      %p130 = por %p128, %p129
      %s132 = sadd.s32 %s131, 1
      %p135 = scmp.eq.s32.totalorder %s34, 1
      %p136 = scmp.ne.s32.totalorder %s131, %s133
      %p137 = scmp.eq.s32.totalorder %s34, 0
      %p138 = por %p136, %p137
      %p139 = scmp.ne.s32.totalorder %s131, %s133
      %p140 = scmp.eq.s32.totalorder %s39, 1
      %p141 = por %p139, %p140
      %p142 = scmp.ne.s32.totalorder %s133, %s134
      %p143 = scmp.eq.s32.totalorder %s39, 0
      %p144 = por %p142, %p143
      %p145 = scmp.ne.s32.totalorder %s133, %s134
      %p146 = scmp.eq.s32.totalorder %s40, 1
      %p147 = por %p145, %p146
      %p149 = scmp.ne.s32.totalorder %s134, %s148
      %p150 = scmp.eq.s32.totalorder %s40, 0
      %p151 = por %p149, %p150
      %s153 = sadd.s32 %s152, 1
      %p156 = scmp.eq.s32.totalorder %s34, 1
      %p157 = scmp.ne.s32.totalorder %s152, %s154
      %p158 = scmp.eq.s32.totalorder %s34, 0
      %p159 = por %p157, %p158
      %p160 = scmp.ne.s32.totalorder %s152, %s154
      %p161 = scmp.eq.s32.totalorder %s39, 1
      %p162 = por %p160, %p161
      %p163 = scmp.ne.s32.totalorder %s154, %s155
      %p164 = scmp.eq.s32.totalorder %s39, 0
      %p165 = por %p163, %p164
      %p166 = scmp.ne.s32.totalorder %s154, %s155
      %p167 = scmp.eq.s32.totalorder %s40, 1
      %p168 = por %p166, %p167
      %p170 = scmp.ne.s32.totalorder %s155, %s169
      %p171 = scmp.eq.s32.totalorder %s40, 0
      %p172 = por %p170, %p171
      %s174 = sadd.s32 %s173, 1
      %p177 = scmp.eq.s32.totalorder %s34, 1
      %p178 = scmp.ne.s32.totalorder %s173, %s175
      %p179 = scmp.eq.s32.totalorder %s34, 0
      %p180 = por %p178, %p179
      %p181 = scmp.ne.s32.totalorder %s173, %s175
      %p182 = scmp.eq.s32.totalorder %s39, 1
      %p183 = por %p181, %p182
      %p184 = scmp.ne.s32.totalorder %s175, %s176
      %p185 = scmp.eq.s32.totalorder %s39, 0
      %p186 = por %p184, %p185
      %p187 = scmp.ne.s32.totalorder %s175, %s176
      %p188 = scmp.eq.s32.totalorder %s40, 1
      %p189 = por %p187, %p188
      %p191 = scmp.ne.s32.totalorder %s176, %s190
      %p192 = scmp.eq.s32.totalorder %s40, 0
      %p193 = por %p191, %p192
      %s195 = sadd.s32 %s194, 1
      %p198 = scmp.eq.s32.totalorder %s34, 1
      %p199 = scmp.ne.s32.totalorder %s194, %s196
      %p200 = scmp.eq.s32.totalorder %s34, 0
      %p201 = por %p199, %p200
      %p202 = scmp.ne.s32.totalorder %s194, %s196
      %p203 = scmp.eq.s32.totalorder %s39, 1
      %p204 = por %p202, %p203
      %p205 = scmp.ne.s32.totalorder %s196, %s197
      %p206 = scmp.eq.s32.totalorder %s39, 0
      %p207 = por %p205, %p206
      %p208 = scmp.ne.s32.totalorder %s196, %s197
      %p209 = scmp.eq.s32.totalorder %s40, 1
      %p210 = por %p208, %p209
      %p212 = scmp.ne.s32.totalorder %s197, %s211
      %p213 = scmp.eq.s32.totalorder %s40, 0
      %p214 = por %p212, %p213
      %s216 = sadd.s32 %s215, 1
      %p219 = scmp.eq.s32.totalorder %s34, 1
      %p220 = scmp.ne.s32.totalorder %s215, %s217
      %p221 = scmp.eq.s32.totalorder %s34, 0
      %p222 = por %p220, %p221
      %p223 = scmp.ne.s32.totalorder %s215, %s217
      %p224 = scmp.eq.s32.totalorder %s39, 1
      %p225 = por %p223, %p224
      %p226 = scmp.ne.s32.totalorder %s217, %s218
      %p227 = scmp.eq.s32.totalorder %s39, 0
      %p228 = por %p226, %p227
      %p229 = scmp.ne.s32.totalorder %s217, %s218
      %p230 = scmp.eq.s32.totalorder %s40, 1
      %p231 = por %p229, %p230
      %p233 = scmp.ne.s32.totalorder %s218, %s232
      %p234 = scmp.eq.s32.totalorder %s40, 0
      %p235 = por %p233, %p234
      %s237 = sadd.s32 %s236, 1
      %p240 = scmp.eq.s32.totalorder %s34, 1
      %p241 = scmp.ne.s32.totalorder %s236, %s238
      %p242 = scmp.eq.s32.totalorder %s34, 0
      %p243 = por %p241, %p242
      %p244 = scmp.ne.s32.totalorder %s236, %s238
      %p245 = scmp.eq.s32.totalorder %s39, 1
      %p246 = por %p244, %p245
      %p247 = scmp.ne.s32.totalorder %s238, %s239
      %p248 = scmp.eq.s32.totalorder %s39, 0
      %p249 = por %p247, %p248
      %p250 = scmp.ne.s32.totalorder %s238, %s239
      %p251 = scmp.eq.s32.totalorder %s40, 1
      %p252 = por %p250, %p251
      %p254 = scmp.ne.s32.totalorder %s239, %s253
      %p255 = scmp.eq.s32.totalorder %s40, 0
      %p256 = por %p254, %p255
      %s258 = sadd.s32 %s257, 1
      %p261 = scmp.eq.s32.totalorder %s34, 1
      %p262 = scmp.ne.s32.totalorder %s257, %s259
      %p263 = scmp.eq.s32.totalorder %s34, 0
      %p264 = por %p262, %p263
      %p265 = scmp.ne.s32.totalorder %s257, %s259
      %p266 = scmp.eq.s32.totalorder %s39, 1
      %p267 = por %p265, %p266
      %p268 = scmp.ne.s32.totalorder %s259, %s260
      %p269 = scmp.eq.s32.totalorder %s39, 0
      %p270 = por %p268, %p269
      %p271 = scmp.ne.s32.totalorder %s259, %s260
      %p272 = scmp.eq.s32.totalorder %s40, 1
      %p273 = por %p271, %p272
      %p275 = scmp.ne.s32.totalorder %s260, %s274
      %p276 = scmp.eq.s32.totalorder %s40, 0
      %p277 = por %p275, %p276
      %s279 = sadd.s32 %s278, 1
      %p282 = scmp.eq.s32.totalorder %s34, 1
      %p283 = scmp.ne.s32.totalorder %s278, %s280
      %p284 = scmp.eq.s32.totalorder %s34, 0
      %p285 = por %p283, %p284
      %p286 = scmp.ne.s32.totalorder %s278, %s280
      %p287 = scmp.eq.s32.totalorder %s39, 1
      %p288 = por %p286, %p287
      %p289 = scmp.ne.s32.totalorder %s280, %s281
      %p290 = scmp.eq.s32.totalorder %s39, 0
      %p291 = por %p289, %p290
      %p292 = scmp.ne.s32.totalorder %s280, %s281
      %p293 = scmp.eq.s32.totalorder %s40, 1
      %p294 = por %p292, %p293
      %p296 = scmp.ne.s32.totalorder %s281, %s295
      %p297 = scmp.eq.s32.totalorder %s40, 0
      %p298 = por %p296, %p297
      %s300 = sadd.s32 %s299, 1
      %p303 = scmp.eq.s32.totalorder %s34, 1
      %p304 = scmp.ne.s32.totalorder %s299, %s301
      %p305 = scmp.eq.s32.totalorder %s34, 0
      %p306 = por %p304, %p305
      %p307 = scmp.ne.s32.totalorder %s299, %s301
      %p308 = scmp.eq.s32.totalorder %s39, 1
      %p309 = por %p307, %p308
      %p310 = scmp.ne.s32.totalorder %s301, %s302
      %p311 = scmp.eq.s32.totalorder %s39, 0
      %p312 = por %p310, %p311
      %p313 = scmp.ne.s32.totalorder %s301, %s302
      %p314 = scmp.eq.s32.totalorder %s40, 1
      %p315 = por %p313, %p314
      %p317 = scmp.ne.s32.totalorder %s302, %s316
      %p318 = scmp.eq.s32.totalorder %s40, 0
      %p319 = por %p317, %p318
      %s320 = ssub.s32 %s34, %s41
      %p321 = scmp.eq.s32.totalorder %s320, 0
      %s323 = sadd.s32 %s322, 1
      %s324 = scalar_select %p321, %s322, %s323
      %p327 = pneg %p321
      %p328 = scmp.eq.s32.totalorder %s34, 1
      %p329 = por %p327, %p328
      %p330 = scmp.ne.s32.totalorder %s322, %s325
      %p331 = scmp.eq.s32.totalorder %s34, 0
      %p332 = por %p330, %p331
      %p333 = scmp.ne.s32.totalorder %s322, %s325
      %p334 = scmp.eq.s32.totalorder %s39, 1
      %p335 = por %p333, %p334
      %p336 = scmp.ne.s32.totalorder %s325, %s326
      %p337 = scmp.eq.s32.totalorder %s39, 0
      %p338 = por %p336, %p337
      %p339 = scmp.ne.s32.totalorder %s325, %s326
      %p340 = scmp.eq.s32.totalorder %s40, 1
      %p341 = por %p339, %p340
      %p343 = scmp.ne.s32.totalorder %s326, %s342
      %p344 = scmp.eq.s32.totalorder %s40, 0
      %p345 = por %p343, %p344
      %s346 = ssub.s32 %s34, %s41
      %p347 = scmp.eq.s32.totalorder %s346, 0
      %s349 = sadd.s32 %s348, 1
      %s350 = scalar_select %p347, %s348, %s349
      %p353 = pneg %p347
      %p354 = scmp.eq.s32.totalorder %s34, 1
      %p355 = por %p353, %p354
      %p356 = scmp.ne.s32.totalorder %s348, %s351
      %p357 = scmp.eq.s32.totalorder %s34, 0
      %p358 = por %p356, %p357
      %p359 = scmp.ne.s32.totalorder %s348, %s351
      %p360 = scmp.eq.s32.totalorder %s39, 1
      %p361 = por %p359, %p360
      %p362 = scmp.ne.s32.totalorder %s351, %s352
      %p363 = scmp.eq.s32.totalorder %s39, 0
      %p364 = por %p362, %p363
      %p365 = scmp.ne.s32.totalorder %s351, %s352
      %p366 = scmp.eq.s32.totalorder %s40, 1
      %p367 = por %p365, %p366
      %p369 = scmp.ne.s32.totalorder %s352, %s368
      %p370 = scmp.eq.s32.totalorder %s40, 0
      %p371 = por %p369, %p370
      %p372 = scmp.le.s32.totalorder 1, %s34
      %p373 = scmp.lt.s32.totalorder %s34, 3
      %p374 = pnand %p372, %p373
      %p375 = pneg %p374
      // Predicated region
      $region9: #{tpu_custom_call.1} parent=5 // pred_check
        _
      $region10: #{tpu_custom_call.1} parent=5 // pred_check_branch
        %377 = sbr.rel (%p374) target = $region12
      $region11: #{tpu_custom_call.1} parent=5 // pred_region
        %s378 = ssub.s32 %s34, 1
        // Predicated region
        $region13: #{tpu_custom_call.1} parent=11 // pred_check
          %p379 = pneg %p81
        $region14: #{tpu_custom_call.1} parent=11 // pred_check_branch
          %381 = sbr.rel (%p379) target = $region16
        $region15: #{tpu_custom_call.1} parent=11 // pred_region
          %s383 = ssub.s32 4096, 4096
          %384 = vsyncadd [#allocation6], %s383
          %s385 = sshll.u32 [#allocation5], 4
          %s386 = int_to_ptr.vmem [resolvable:$true] %s385
          %391 = dma.hbm_to_vmem [thread:$0]  %s1, 4096, %s386, [#allocation6], 128, 128, 8
        $region16: #{tpu_custom_call.1} parent=11 // pred_fallthru
          _
        // Predicated region
        $region17: #{tpu_custom_call.1} parent=11 // pred_check
          %p392 = pneg %p102
        $region18: #{tpu_custom_call.1} parent=11 // pred_check_branch
          %394 = sbr.rel (%p392) target = $region20
        $region19: #{tpu_custom_call.1} parent=11 // pred_region
          _
        $region20: #{tpu_custom_call.1} parent=11 // pred_fallthru
          _
        // Predicated region
        $region21: #{tpu_custom_call.1} parent=11 // pred_check
          %p395 = pneg %p123
        $region22: #{tpu_custom_call.1} parent=11 // pred_check_branch
          %397 = sbr.rel (%p395) target = $region24
        $region23: #{tpu_custom_call.1} parent=11 // pred_region
          %s399 = ssub.s32 4096, 4096
          %400 = vsyncadd [#allocation6], %s399
          %s401 = sshll.u32 [#allocation7], 4
          %s402 = int_to_ptr.vmem [resolvable:$true] %s401
          %407 = dma.hbm_to_vmem [thread:$0]  %s3, 4096, %s402, [#allocation6], 128, 128, 8
        $region24: #{tpu_custom_call.1} parent=11 // pred_fallthru
          _
        // Predicated region
        $region25: #{tpu_custom_call.1} parent=11 // pred_check
          %p408 = pneg %p144
        $region26: #{tpu_custom_call.1} parent=11 // pred_check_branch
          %410 = sbr.rel (%p408) target = $region28
        $region27: #{tpu_custom_call.1} parent=11 // pred_region
          _
        $region28: #{tpu_custom_call.1} parent=11 // pred_fallthru
          _
        // Predicated region
        $region29: #{tpu_custom_call.1} parent=11 // pred_check
          %p411 = pneg %p165
        $region30: #{tpu_custom_call.1} parent=11 // pred_check_branch
          %413 = sbr.rel (%p411) target = $region32
        $region31: #{tpu_custom_call.1} parent=11 // pred_region
          %s415 = ssub.s32 2048, 2048
          %416 = vsyncadd [#allocation9], %s415
          %s417 = sshll.u32 [#allocation8], 4
          %s418 = int_to_ptr.vmem [resolvable:$true] %s417
          %423 = dma.hbm_to_vmem [thread:$0]  %s5, 2048, %s418, [#allocation9], 64, 64, 4
        $region32: #{tpu_custom_call.1} parent=11 // pred_fallthru
          _
        // Predicated region
        $region33: #{tpu_custom_call.1} parent=11 // pred_check
          %p424 = pneg %p186
        $region34: #{tpu_custom_call.1} parent=11 // pred_check_branch
          %426 = sbr.rel (%p424) target = $region36
        $region35: #{tpu_custom_call.1} parent=11 // pred_region
          %s428 = ssub.s32 16, 16
          %429 = vsyncadd [#allocation9], %s428
          %s431 = sshll.u32 [#allocation10], 4
          %s432 = int_to_ptr.vmem [resolvable:$true] %s431
          %434 = dma.hbm_to_vmem [thread:$0]  %s6, 16, %s432, [#allocation9]
        $region36: #{tpu_custom_call.1} parent=11 // pred_fallthru
          _
        // Predicated region
        $region37: #{tpu_custom_call.1} parent=11 // pred_check
          %p435 = pneg %p207
        $region38: #{tpu_custom_call.1} parent=11 // pred_check_branch
          %437 = sbr.rel (%p435) target = $region40
        $region39: #{tpu_custom_call.1} parent=11 // pred_region
          %s439 = ssub.s32 2048, 2048
          %440 = vsyncadd [#allocation12], %s439
          %s441 = sshll.u32 [#allocation11], 4
          %s442 = int_to_ptr.vmem [resolvable:$true] %s441
          %447 = dma.hbm_to_vmem [thread:$0]  %s7, 2048, %s442, [#allocation12], 128, 128, 8
        $region40: #{tpu_custom_call.1} parent=11 // pred_fallthru
          _
        // Predicated region
        $region41: #{tpu_custom_call.1} parent=11 // pred_check
          %p448 = pneg %p228
        $region42: #{tpu_custom_call.1} parent=11 // pred_check_branch
          %450 = sbr.rel (%p448) target = $region44
        $region43: #{tpu_custom_call.1} parent=11 // pred_region
          _
        $region44: #{tpu_custom_call.1} parent=11 // pred_fallthru
          _
        // Predicated region
        $region45: #{tpu_custom_call.1} parent=11 // pred_check
          %p451 = pneg %p249
        $region46: #{tpu_custom_call.1} parent=11 // pred_check_branch
          %453 = sbr.rel (%p451) target = $region48
        $region47: #{tpu_custom_call.1} parent=11 // pred_region
          %s455 = ssub.s32 4096, 4096
          %456 = vsyncadd [#allocation12], %s455
          %s457 = sshll.u32 [#allocation13], 4
          %s458 = int_to_ptr.vmem [resolvable:$true] %s457
          %463 = dma.hbm_to_vmem [thread:$0]  %s9, 4096, %s458, [#allocation12], 128, 128, 8
        $region48: #{tpu_custom_call.1} parent=11 // pred_fallthru
          _
        // Predicated region
        $region49: #{tpu_custom_call.1} parent=11 // pred_check
          %p464 = pneg %p270
        $region50: #{tpu_custom_call.1} parent=11 // pred_check_branch
          %466 = sbr.rel (%p464) target = $region52
        $region51: #{tpu_custom_call.1} parent=11 // pred_region
          _
        $region52: #{tpu_custom_call.1} parent=11 // pred_fallthru
          _
        // Predicated region
        $region53: #{tpu_custom_call.1} parent=11 // pred_check
          %p467 = pneg %p291
        $region54: #{tpu_custom_call.1} parent=11 // pred_check_branch
          %469 = sbr.rel (%p467) target = $region56
        $region55: #{tpu_custom_call.1} parent=11 // pred_region
          %s471 = ssub.s32 4096, 4096
          %472 = vsyncadd [#allocation15], %s471
          %s473 = sshll.u32 [#allocation14], 4
          %s474 = int_to_ptr.vmem [resolvable:$true] %s473
          %479 = dma.hbm_to_vmem [thread:$0]  %s11, 4096, %s474, [#allocation15], 128, 128, 8
        $region56: #{tpu_custom_call.1} parent=11 // pred_fallthru
          _
        // Predicated region
        $region57: #{tpu_custom_call.1} parent=11 // pred_check
          %p480 = pneg %p312
        $region58: #{tpu_custom_call.1} parent=11 // pred_check_branch
          %482 = sbr.rel (%p480) target = $region60
        $region59: #{tpu_custom_call.1} parent=11 // pred_region
          _
        $region60: #{tpu_custom_call.1} parent=11 // pred_fallthru
          _
      $region12: #{tpu_custom_call.1} parent=5 // pred_fallthru
        _
      %p483 = scmp.lt.s32.totalorder %s34, 2
      // Predicated region
      $region61: #{tpu_custom_call.1} parent=5 // pred_check
        %p484 = pneg %p483
      $region62: #{tpu_custom_call.1} parent=5 // pred_check_branch
        %486 = sbr.rel (%p484) target = $region64
      $region63: #{tpu_custom_call.1} parent=5 // pred_region
        // Predicated region
        $region65: #{tpu_custom_call.1} parent=63 // pred_check
          %p487 = pneg %p54
        $region66: #{tpu_custom_call.1} parent=63 // pred_check_branch
          %489 = sbr.rel (%p487) target = $region68
        $region67: #{tpu_custom_call.1} parent=63 // pred_region
          %s490 = sand.u32 %s44, 1
          %s491 = scalar_lea.sflag [#allocation3], %s490
          %s492 = sand.u32 %s44, 1
          %s493 = smul.addr %s492, 8
          %s494 = scalar_lea.vmem [#allocation2], %s493
          %s496 = ssub.s32 128, 128
          %497 = vsyncadd %s491, %s496
          %s498 = smul.addr %s34, 2
          %s499 = smul.addr %s498, 64
          %s500 = scalar_lea.hbm %s0, %s499
          %s502 = sshll.u32 %s494, 4
          %s503 = int_to_ptr.vmem [resolvable:$true] %s502
          %505 = dma.hbm_to_vmem [thread:$0]  %s500, 128, %s503, %s491
        $region68: #{tpu_custom_call.1} parent=63 // pred_fallthru
          _
      $region64: #{tpu_custom_call.1} parent=5 // pred_fallthru
        _
      %p506 = scmp.le.s32.totalorder 1, %s34
      %p507 = scmp.lt.s32.totalorder %s34, 3
      %p508 = pnand %p506, %p507
      %p509 = pneg %p508
      // Predicated region
      $region69: #{tpu_custom_call.1} parent=5 // pred_check
        _
      $region70: #{tpu_custom_call.1} parent=5 // pred_check_branch
        %511 = sbr.rel (%p508) target = $region72
      $region71: #{tpu_custom_call.1} parent=5 // pred_region
        %s512 = ssub.s32 %s34, 1
        %s513 = sand.u32 %s47, 1
        %s514 = scalar_lea.sflag [#allocation3], %s513
        %s515 = sand.u32 %s47, 1
        %s516 = smul.addr %s515, 8
        %s517 = scalar_lea.vmem [#allocation2], %s516
        // Predicated region
        $region73: #{tpu_custom_call.1} parent=71 // pred_check
          %p518 = pneg %p60
        $region74: #{tpu_custom_call.1} parent=71 // pred_check_branch
          %520 = sbr.rel (%p518) target = $region76
        $region75: #{tpu_custom_call.1} parent=71 // pred_region
          %521 = dma.done %s514, 128
        $region76: #{tpu_custom_call.1} parent=71 // pred_fallthru
          _
        // Predicated region
        $region77: #{tpu_custom_call.1} parent=71 // pred_check
          %p522 = pneg %p81
        $region78: #{tpu_custom_call.1} parent=71 // pred_check_branch
          %524 = sbr.rel (%p522) target = $region80
        $region79: #{tpu_custom_call.1} parent=71 // pred_region
          %525 = dma.done [#allocation6], 4096
        $region80: #{tpu_custom_call.1} parent=71 // pred_fallthru
          _
        // Predicated region
        $region81: #{tpu_custom_call.1} parent=71 // pred_check
          %p526 = pneg %p123
        $region82: #{tpu_custom_call.1} parent=71 // pred_check_branch
          %528 = sbr.rel (%p526) target = $region84
        $region83: #{tpu_custom_call.1} parent=71 // pred_region
          %529 = dma.done [#allocation6], 4096
        $region84: #{tpu_custom_call.1} parent=71 // pred_fallthru
          _
        // Predicated region
        $region85: #{tpu_custom_call.1} parent=71 // pred_check
          %p530 = pneg %p165
        $region86: #{tpu_custom_call.1} parent=71 // pred_check_branch
          %532 = sbr.rel (%p530) target = $region88
        $region87: #{tpu_custom_call.1} parent=71 // pred_region
          %533 = dma.done [#allocation9], 2048
        $region88: #{tpu_custom_call.1} parent=71 // pred_fallthru
          _
        // Predicated region
        $region89: #{tpu_custom_call.1} parent=71 // pred_check
          %p534 = pneg %p186
        $region90: #{tpu_custom_call.1} parent=71 // pred_check_branch
          %536 = sbr.rel (%p534) target = $region92
        $region91: #{tpu_custom_call.1} parent=71 // pred_region
          %537 = dma.done [#allocation9], 16
        $region92: #{tpu_custom_call.1} parent=71 // pred_fallthru
          _
        // Predicated region
        $region93: #{tpu_custom_call.1} parent=71 // pred_check
          %p538 = pneg %p207
        $region94: #{tpu_custom_call.1} parent=71 // pred_check_branch
          %540 = sbr.rel (%p538) target = $region96
        $region95: #{tpu_custom_call.1} parent=71 // pred_region
          %541 = dma.done [#allocation12], 2048
        $region96: #{tpu_custom_call.1} parent=71 // pred_fallthru
          _
        // Predicated region
        $region97: #{tpu_custom_call.1} parent=71 // pred_check
          %p542 = pneg %p249
        $region98: #{tpu_custom_call.1} parent=71 // pred_check_branch
          %544 = sbr.rel (%p542) target = $region100
        $region99: #{tpu_custom_call.1} parent=71 // pred_region
          %545 = dma.done [#allocation12], 4096
        $region100: #{tpu_custom_call.1} parent=71 // pred_fallthru
          _
        // Predicated region
        $region101: #{tpu_custom_call.1} parent=71 // pred_check
          %p546 = pneg %p291
        $region102: #{tpu_custom_call.1} parent=71 // pred_check_branch
          %548 = sbr.rel (%p546) target = $region104
        $region103: #{tpu_custom_call.1} parent=71 // pred_region
          %549 = dma.done [#allocation15], 4096
        $region104: #{tpu_custom_call.1} parent=71 // pred_fallthru
          _
        %s550 = sand.u32 %s47, 1
        %s551 = scalar_lea.sflag [#allocation3], %s550
        %s552 = sand.u32 %s47, 1
        %s553 = smul.addr %s552, 8
        %s554 = scalar_lea.vmem [#allocation2], %s553
        %p555 = pneg %p60
        %p556 = pneg %p57
        %p557 = pneg %p81
        %p558 = pneg %p78
        %p559 = pneg %p102
        %p560 = pneg %p99
        %p561 = pneg %p123
        %p562 = pneg %p120
        %p563 = pneg %p144
        %p564 = pneg %p141
        %p565 = pneg %p165
        %p566 = pneg %p162
        %p567 = pneg %p186
        %p568 = pneg %p183
        %p569 = pneg %p207
        %p570 = pneg %p204
        %p571 = pneg %p228
        %p572 = pneg %p225
        %p573 = pneg %p249
        %p574 = pneg %p246
        %p575 = pneg %p270
        %p576 = pneg %p267
        %p577 = pneg %p291
        %p578 = pneg %p288
        %p579 = pneg %p312
        %p580 = pneg %p309
        %p581 = pneg %p338
        %p582 = pneg %p335
        %s583 = sand.u32 %s325, 1
        %s584 = scalar_lea.sflag [#allocation4], %s583
        %s585 = sand.u32 %s325, 1
        %s586 = smul.addr %s585, 8
        %s587 = scalar_lea.vmem [#allocation16], %s586
        %p588 = pneg %p364
        %p589 = pneg %p361
        %s590 = sand.u32 %s351, 1
        %s591 = scalar_lea.sflag [#allocation18], %s590
        %s592 = sand.u32 %s351, 1
        %s593 = smul.addr %s592, 16
        %s594 = scalar_lea.vmem [#allocation17], %s593
        %v596 = vld [vmem:[%s517] sm:$0xff]
        %v597 = vld [vmem:[#allocation5] sm:$0xff]
        %v598 = vld [vmem:[#allocation5 + $0x8] sm:$0xff]
        %v599 = vld [vmem:[#allocation5 + $0x10] sm:$0xff]
        %v600 = vld [vmem:[#allocation5 + $0x18] sm:$0xff]
        %v601 = vld [vmem:[#allocation5 + $0x20] sm:$0xff]
        %v602 = vld [vmem:[#allocation5 + $0x28] sm:$0xff]
        %v603 = vld [vmem:[#allocation5 + $0x30] sm:$0xff]
        %v604 = vld [vmem:[#allocation5 + $0x38] sm:$0xff]
        %v605 = vld [vmem:[#allocation5 + $0x40] sm:$0xff]
        %v606 = vld [vmem:[#allocation5 + $0x48] sm:$0xff]
        %v607 = vld [vmem:[#allocation5 + $0x50] sm:$0xff]
        %v608 = vld [vmem:[#allocation5 + $0x58] sm:$0xff]
        %v609 = vld [vmem:[#allocation5 + $0x60] sm:$0xff]
        %v610 = vld [vmem:[#allocation5 + $0x68] sm:$0xff]
        %v611 = vld [vmem:[#allocation5 + $0x70] sm:$0xff]
        %v612 = vld [vmem:[#allocation5 + $0x78] sm:$0xff]
        %v613 = vld [vmem:[#allocation5 + $0x80] sm:$0xff]
        %v614 = vld [vmem:[#allocation5 + $0x88] sm:$0xff]
        %v615 = vld [vmem:[#allocation5 + $0x90] sm:$0xff]
        %v616 = vld [vmem:[#allocation5 + $0x98] sm:$0xff]
        %v617 = vld [vmem:[#allocation5 + $0xa0] sm:$0xff]
        %v618 = vld [vmem:[#allocation5 + $0xa8] sm:$0xff]
        %v619 = vld [vmem:[#allocation5 + $0xb0] sm:$0xff]
        %v620 = vld [vmem:[#allocation5 + $0xb8] sm:$0xff]
        %v621 = vld [vmem:[#allocation5 + $0xc0] sm:$0xff]
        %v622 = vld [vmem:[#allocation5 + $0xc8] sm:$0xff]
        %v623 = vld [vmem:[#allocation5 + $0xd0] sm:$0xff]
        %v624 = vld [vmem:[#allocation5 + $0xd8] sm:$0xff]
        %v625 = vld [vmem:[#allocation5 + $0xe0] sm:$0xff]
        %v626 = vld [vmem:[#allocation5 + $0xe8] sm:$0xff]
        %v627 = vld [vmem:[#allocation5 + $0xf0] sm:$0xff]
        %v628 = vld [vmem:[#allocation5 + $0xf8] sm:$0xff]
        %v629 = vld [vmem:[%s2] sm:$0x3]
        %v631 = vlaneseq
        %v632 = vshrl.u32 %v631, 7
        %v633 = vsub.s32 0, %v632
        %v634 = vrot.slane %v629, %v633
        %v635 = vlaneseq
        %v636 = vshrl.u32 %v635, 7
        %v637 = vsub.s32 1, %v636
        %v638 = vrot.slane %v629, %v637
        %v642 = vunpack.c.l.b16 %v596
        %v643 = vunpack.c.h.b16 %v596
        %v644 = vpack.c.b16 %v642, %v642
        %v645 = vpack.c.b16 %v643, %v643
        %v680 = vunpack.c.l.b16 %v597
        %v681 = vunpack.c.h.b16 %v597
        %v682 = vunpack.c.l.b16 %v598
        %v683 = vunpack.c.h.b16 %v598
        %v684 = vunpack.c.l.b16 %v599
        %v685 = vunpack.c.h.b16 %v599
        %v686 = vunpack.c.l.b16 %v600
        %v687 = vunpack.c.h.b16 %v600
        %v688 = vunpack.c.l.b16 %v601
        %v689 = vunpack.c.h.b16 %v601
        %v690 = vunpack.c.l.b16 %v602
        %v691 = vunpack.c.h.b16 %v602
        %v692 = vunpack.c.l.b16 %v603
        %v693 = vunpack.c.h.b16 %v603
        %v694 = vunpack.c.l.b16 %v604
        %v695 = vunpack.c.h.b16 %v604
        %v696 = vunpack.c.l.b16 %v605
        %v697 = vunpack.c.h.b16 %v605
        %v698 = vunpack.c.l.b16 %v606
        %v699 = vunpack.c.h.b16 %v606
        %v700 = vunpack.c.l.b16 %v607
        %v701 = vunpack.c.h.b16 %v607
        %v702 = vunpack.c.l.b16 %v608
        %v703 = vunpack.c.h.b16 %v608
        %v704 = vunpack.c.l.b16 %v609
        %v705 = vunpack.c.h.b16 %v609
        %v706 = vunpack.c.l.b16 %v610
        %v707 = vunpack.c.h.b16 %v610
        %v708 = vunpack.c.l.b16 %v611
        %v709 = vunpack.c.h.b16 %v611
        %v710 = vunpack.c.l.b16 %v612
        %v711 = vunpack.c.h.b16 %v612
        %v712 = vunpack.c.l.b16 %v613
        %v713 = vunpack.c.h.b16 %v613
        %v714 = vunpack.c.l.b16 %v614
        %v715 = vunpack.c.h.b16 %v614
        %v716 = vunpack.c.l.b16 %v615
        %v717 = vunpack.c.h.b16 %v615
        %v718 = vunpack.c.l.b16 %v616
        %v719 = vunpack.c.h.b16 %v616
        %v720 = vunpack.c.l.b16 %v617
        %v721 = vunpack.c.h.b16 %v617
        %v722 = vunpack.c.l.b16 %v618
        %v723 = vunpack.c.h.b16 %v618
        %v724 = vunpack.c.l.b16 %v619
        %v725 = vunpack.c.h.b16 %v619
        %v726 = vunpack.c.l.b16 %v620
        %v727 = vunpack.c.h.b16 %v620
        %v728 = vunpack.c.l.b16 %v621
        %v729 = vunpack.c.h.b16 %v621
        %v730 = vunpack.c.l.b16 %v622
        %v731 = vunpack.c.h.b16 %v622
        %v732 = vunpack.c.l.b16 %v623
        %v733 = vunpack.c.h.b16 %v623
        %v734 = vunpack.c.l.b16 %v624
        %v735 = vunpack.c.h.b16 %v624
        %v736 = vunpack.c.l.b16 %v625
        %v737 = vunpack.c.h.b16 %v625
        %v738 = vunpack.c.l.b16 %v626
        %v739 = vunpack.c.h.b16 %v626
        %v740 = vunpack.c.l.b16 %v627
        %v741 = vunpack.c.h.b16 %v627
        %v742 = vunpack.c.l.b16 %v628
        %v743 = vunpack.c.h.b16 %v628
        %v744 = vpack.c.b16 %v682, %v680
        %v745 = vpack.c.b16 %v683, %v681
        %v746 = vpack.c.b16 %v686, %v684
        %v747 = vpack.c.b16 %v687, %v685
        %v748 = vpack.c.b16 %v690, %v688
        %v749 = vpack.c.b16 %v691, %v689
        %v750 = vpack.c.b16 %v694, %v692
        %v751 = vpack.c.b16 %v695, %v693
        %v752 = vpack.c.b16 %v698, %v696
        %v753 = vpack.c.b16 %v699, %v697
        %v754 = vpack.c.b16 %v702, %v700
        %v755 = vpack.c.b16 %v703, %v701
        %v756 = vpack.c.b16 %v706, %v704
        %v757 = vpack.c.b16 %v707, %v705
        %v758 = vpack.c.b16 %v710, %v708
        %v759 = vpack.c.b16 %v711, %v709
        %v760 = vpack.c.b16 %v714, %v712
        %v761 = vpack.c.b16 %v715, %v713
        %v762 = vpack.c.b16 %v718, %v716
        %v763 = vpack.c.b16 %v719, %v717
        %v764 = vpack.c.b16 %v722, %v720
        %v765 = vpack.c.b16 %v723, %v721
        %v766 = vpack.c.b16 %v726, %v724
        %v767 = vpack.c.b16 %v727, %v725
        %v768 = vpack.c.b16 %v730, %v728
        %v769 = vpack.c.b16 %v731, %v729
        %v770 = vpack.c.b16 %v734, %v732
        %v771 = vpack.c.b16 %v735, %v733
        %v772 = vpack.c.b16 %v738, %v736
        %v773 = vpack.c.b16 %v739, %v737
        %v774 = vpack.c.b16 %v742, %v740
        %v775 = vpack.c.b16 %v743, %v741
        %808 = vmatprep.subr.bf16.mxu0 %v759
        %809 = vmatpush1.bf16.msra.mxu0 %v758
        %810 = vmatprep.subr.bf16.mxu0 %v757
        %811 = vmatpush1.bf16.msra.mxu0 %v756
        %812 = vmatprep.subr.bf16.mxu0 %v755
        %813 = vmatpush1.bf16.msra.mxu0 %v754
        %814 = vmatprep.subr.bf16.mxu0 %v753
        %815 = vmatpush1.bf16.msra.mxu0 %v752
        %816 = vmatprep.subr.bf16.mxu0 %v751
        %817 = vmatpush1.bf16.msra.mxu0 %v750
        %818 = vmatprep.subr.bf16.mxu0 %v749
        %819 = vmatpush1.bf16.msra.mxu0 %v748
        %820 = vmatprep.subr.bf16.mxu0 %v747
        %821 = vmatpush1.bf16.msra.mxu0 %v746
        %822 = vmatprep.subr.bf16.mxu0 %v745
        %823 = vmatpush1.bf16.msra.mxu0 %v744
        %824 = vmatprep.subr.bf16.mxu0 %v775
        %825 = vmatpush2.bf16.msra.mxu0 %v774
        %826 = vmatprep.subr.bf16.mxu0 %v773
        %827 = vmatpush2.bf16.msra.mxu0 %v772
        %828 = vmatprep.subr.bf16.mxu0 %v771
        %829 = vmatpush2.bf16.msra.mxu0 %v770
        %830 = vmatprep.subr.bf16.mxu0 %v769
        %831 = vmatpush2.bf16.msra.mxu0 %v768
        %832 = vmatprep.subr.bf16.mxu0 %v767
        %833 = vmatpush2.bf16.msra.mxu0 %v766
        %834 = vmatprep.subr.bf16.mxu0 %v765
        %835 = vmatpush2.bf16.msra.mxu0 %v764
        %836 = vmatprep.subr.bf16.mxu0 %v763
        %837 = vmatpush2.bf16.msra.mxu0 %v762
        %838 = vmatprep.subr.bf16.mxu0 %v761
        %839 = vmatpush2.bf16.msra.mxu0 %v760
        %840 = vmatprep.mubr.bf16.mxu0 %v645
        %841 = vmatmul.mubr.bf16.gmra.mxu0 %v644
        %v842 = vpop.f32.mrf.mxu0
        %v843 = vadd.f32 %v634, %v842
        %v844 = vpop.f32.mrf.mxu0
        %v845 = vadd.f32 %v638, %v844
        %v846 = vpop.f32.mrf.mxu0
        %v847 = vpop.f32.mrf.mxu0
        %848 = vdwg.mxu0
        %v849 = vtanh.pop %v843
        %v850 = vtanh.pop %v845
        %v851 = vpack.c.bf16 %v849, %v849
        %v852 = vpack.c.bf16 %v850, %v850
        %v853 = vld [vmem:[#allocation7] sm:$0xff]
        %v854 = vld [vmem:[#allocation7 + $0x8] sm:$0xff]
        %v855 = vld [vmem:[#allocation7 + $0x10] sm:$0xff]
        %v856 = vld [vmem:[#allocation7 + $0x18] sm:$0xff]
        %v857 = vld [vmem:[#allocation7 + $0x20] sm:$0xff]
        %v858 = vld [vmem:[#allocation7 + $0x28] sm:$0xff]
        %v859 = vld [vmem:[#allocation7 + $0x30] sm:$0xff]
        %v860 = vld [vmem:[#allocation7 + $0x38] sm:$0xff]
        %v861 = vld [vmem:[#allocation7 + $0x40] sm:$0xff]
        %v862 = vld [vmem:[#allocation7 + $0x48] sm:$0xff]
        %v863 = vld [vmem:[#allocation7 + $0x50] sm:$0xff]
        %v864 = vld [vmem:[#allocation7 + $0x58] sm:$0xff]
        %v865 = vld [vmem:[#allocation7 + $0x60] sm:$0xff]
        %v866 = vld [vmem:[#allocation7 + $0x68] sm:$0xff]
        %v867 = vld [vmem:[#allocation7 + $0x70] sm:$0xff]
        %v868 = vld [vmem:[#allocation7 + $0x78] sm:$0xff]
        %v869 = vld [vmem:[#allocation7 + $0x80] sm:$0xff]
        %v870 = vld [vmem:[#allocation7 + $0x88] sm:$0xff]
        %v871 = vld [vmem:[#allocation7 + $0x90] sm:$0xff]
        %v872 = vld [vmem:[#allocation7 + $0x98] sm:$0xff]
        %v873 = vld [vmem:[#allocation7 + $0xa0] sm:$0xff]
        %v874 = vld [vmem:[#allocation7 + $0xa8] sm:$0xff]
        %v875 = vld [vmem:[#allocation7 + $0xb0] sm:$0xff]
        %v876 = vld [vmem:[#allocation7 + $0xb8] sm:$0xff]
        %v877 = vld [vmem:[#allocation7 + $0xc0] sm:$0xff]
        %v878 = vld [vmem:[#allocation7 + $0xc8] sm:$0xff]
        %v879 = vld [vmem:[#allocation7 + $0xd0] sm:$0xff]
        %v880 = vld [vmem:[#allocation7 + $0xd8] sm:$0xff]
        %v881 = vld [vmem:[#allocation7 + $0xe0] sm:$0xff]
        %v882 = vld [vmem:[#allocation7 + $0xe8] sm:$0xff]
        %v883 = vld [vmem:[#allocation7 + $0xf0] sm:$0xff]
        %v884 = vld [vmem:[#allocation7 + $0xf8] sm:$0xff]
        %v885 = vld [vmem:[%s4] sm:$0x3]
        %v887 = vlaneseq
        %v888 = vshrl.u32 %v887, 7
        %v889 = vsub.s32 0, %v888
        %v890 = vrot.slane %v885, %v889
        %v891 = vlaneseq
        %v892 = vshrl.u32 %v891, 7
        %v893 = vsub.s32 1, %v892
        %v894 = vrot.slane %v885, %v893
        %v929 = vunpack.c.l.b16 %v853
        %v930 = vunpack.c.h.b16 %v853
        %v931 = vunpack.c.l.b16 %v854
        %v932 = vunpack.c.h.b16 %v854
        %v933 = vunpack.c.l.b16 %v855
        %v934 = vunpack.c.h.b16 %v855
        %v935 = vunpack.c.l.b16 %v856
        %v936 = vunpack.c.h.b16 %v856
        %v937 = vunpack.c.l.b16 %v857
        %v938 = vunpack.c.h.b16 %v857
        %v939 = vunpack.c.l.b16 %v858
        %v940 = vunpack.c.h.b16 %v858
        %v941 = vunpack.c.l.b16 %v859
        %v942 = vunpack.c.h.b16 %v859
        %v943 = vunpack.c.l.b16 %v860
        %v944 = vunpack.c.h.b16 %v860
        %v945 = vunpack.c.l.b16 %v861
        %v946 = vunpack.c.h.b16 %v861
        %v947 = vunpack.c.l.b16 %v862
        %v948 = vunpack.c.h.b16 %v862
        %v949 = vunpack.c.l.b16 %v863
        %v950 = vunpack.c.h.b16 %v863
        %v951 = vunpack.c.l.b16 %v864
        %v952 = vunpack.c.h.b16 %v864
        %v953 = vunpack.c.l.b16 %v865
        %v954 = vunpack.c.h.b16 %v865
        %v955 = vunpack.c.l.b16 %v866
        %v956 = vunpack.c.h.b16 %v866
        %v957 = vunpack.c.l.b16 %v867
        %v958 = vunpack.c.h.b16 %v867
        %v959 = vunpack.c.l.b16 %v868
        %v960 = vunpack.c.h.b16 %v868
        %v961 = vunpack.c.l.b16 %v869
        %v962 = vunpack.c.h.b16 %v869
        %v963 = vunpack.c.l.b16 %v870
        %v964 = vunpack.c.h.b16 %v870
        %v965 = vunpack.c.l.b16 %v871
        %v966 = vunpack.c.h.b16 %v871
        %v967 = vunpack.c.l.b16 %v872
        %v968 = vunpack.c.h.b16 %v872
        %v969 = vunpack.c.l.b16 %v873
        %v970 = vunpack.c.h.b16 %v873
        %v971 = vunpack.c.l.b16 %v874
        %v972 = vunpack.c.h.b16 %v874
        %v973 = vunpack.c.l.b16 %v875
        %v974 = vunpack.c.h.b16 %v875
        %v975 = vunpack.c.l.b16 %v876
        %v976 = vunpack.c.h.b16 %v876
        %v977 = vunpack.c.l.b16 %v877
        %v978 = vunpack.c.h.b16 %v877
        %v979 = vunpack.c.l.b16 %v878
        %v980 = vunpack.c.h.b16 %v878
        %v981 = vunpack.c.l.b16 %v879
        %v982 = vunpack.c.h.b16 %v879
        %v983 = vunpack.c.l.b16 %v880
        %v984 = vunpack.c.h.b16 %v880
        %v985 = vunpack.c.l.b16 %v881
        %v986 = vunpack.c.h.b16 %v881
        %v987 = vunpack.c.l.b16 %v882
        %v988 = vunpack.c.h.b16 %v882
        %v989 = vunpack.c.l.b16 %v883
        %v990 = vunpack.c.h.b16 %v883
        %v991 = vunpack.c.l.b16 %v884
        %v992 = vunpack.c.h.b16 %v884
        %v993 = vpack.c.b16 %v931, %v929
        %v994 = vpack.c.b16 %v932, %v930
        %v995 = vpack.c.b16 %v935, %v933
        %v996 = vpack.c.b16 %v936, %v934
        %v997 = vpack.c.b16 %v939, %v937
        %v998 = vpack.c.b16 %v940, %v938
        %v999 = vpack.c.b16 %v943, %v941
        %v1000 = vpack.c.b16 %v944, %v942
        %v1001 = vpack.c.b16 %v947, %v945
        %v1002 = vpack.c.b16 %v948, %v946
        %v1003 = vpack.c.b16 %v951, %v949
        %v1004 = vpack.c.b16 %v952, %v950
        %v1005 = vpack.c.b16 %v955, %v953
        %v1006 = vpack.c.b16 %v956, %v954
        %v1007 = vpack.c.b16 %v959, %v957
        %v1008 = vpack.c.b16 %v960, %v958
        %v1009 = vpack.c.b16 %v963, %v961
        %v1010 = vpack.c.b16 %v964, %v962
        %v1011 = vpack.c.b16 %v967, %v965
        %v1012 = vpack.c.b16 %v968, %v966
        %v1013 = vpack.c.b16 %v971, %v969
        %v1014 = vpack.c.b16 %v972, %v970
        %v1015 = vpack.c.b16 %v975, %v973
        %v1016 = vpack.c.b16 %v976, %v974
        %v1017 = vpack.c.b16 %v979, %v977
        %v1018 = vpack.c.b16 %v980, %v978
        %v1019 = vpack.c.b16 %v983, %v981
        %v1020 = vpack.c.b16 %v984, %v982
        %v1021 = vpack.c.b16 %v987, %v985
        %v1022 = vpack.c.b16 %v988, %v986
        %v1023 = vpack.c.b16 %v991, %v989
        %v1024 = vpack.c.b16 %v992, %v990
        %1057 = vmatprep.subr.bf16.mxu0 %v1008
        %1058 = vmatpush1.bf16.msra.mxu0 %v1007
        %1059 = vmatprep.subr.bf16.mxu0 %v1006
        %1060 = vmatpush1.bf16.msra.mxu0 %v1005
        %1061 = vmatprep.subr.bf16.mxu0 %v1004
        %1062 = vmatpush1.bf16.msra.mxu0 %v1003
        %1063 = vmatprep.subr.bf16.mxu0 %v1002
        %1064 = vmatpush1.bf16.msra.mxu0 %v1001
        %1065 = vmatprep.subr.bf16.mxu0 %v1000
        %1066 = vmatpush1.bf16.msra.mxu0 %v999
        %1067 = vmatprep.subr.bf16.mxu0 %v998
        %1068 = vmatpush1.bf16.msra.mxu0 %v997
        %1069 = vmatprep.subr.bf16.mxu0 %v996
        %1070 = vmatpush1.bf16.msra.mxu0 %v995
        %1071 = vmatprep.subr.bf16.mxu0 %v994
        %1072 = vmatpush1.bf16.msra.mxu0 %v993
        %1073 = vmatprep.subr.bf16.mxu0 %v1024
        %1074 = vmatpush2.bf16.msra.mxu0 %v1023
        %1075 = vmatprep.subr.bf16.mxu0 %v1022
        %1076 = vmatpush2.bf16.msra.mxu0 %v1021
        %1077 = vmatprep.subr.bf16.mxu0 %v1020
        %1078 = vmatpush2.bf16.msra.mxu0 %v1019
        %1079 = vmatprep.subr.bf16.mxu0 %v1018
        %1080 = vmatpush2.bf16.msra.mxu0 %v1017
        %1081 = vmatprep.subr.bf16.mxu0 %v1016
        %1082 = vmatpush2.bf16.msra.mxu0 %v1015
        %1083 = vmatprep.subr.bf16.mxu0 %v1014
        %1084 = vmatpush2.bf16.msra.mxu0 %v1013
        %1085 = vmatprep.subr.bf16.mxu0 %v1012
        %1086 = vmatpush2.bf16.msra.mxu0 %v1011
        %1087 = vmatprep.subr.bf16.mxu0 %v1010
        %1088 = vmatpush2.bf16.msra.mxu0 %v1009
        %1089 = vmatprep.mubr.bf16.mxu0 %v852
        %1090 = vmatmul.mubr.bf16.gmra.mxu0 %v851
        %v1091 = vpop.f32.mrf.mxu0
        %v1092 = vadd.f32 %v890, %v1091
        %v1093 = vpop.f32.mrf.mxu0
        %v1094 = vadd.f32 %v894, %v1093
        %v1095 = vpop.f32.mrf.mxu0
        %v1096 = vpop.f32.mrf.mxu0
        %1097 = vdwg.mxu0
        %v1098 = vtanh.pop %v1092
        %v1099 = vtanh.pop %v1094
        %v1100 = vpack.c.bf16 %v1098, %v1098
        %v1101 = vpack.c.bf16 %v1099, %v1099
        %v1102 = vld [vmem:[#allocation8] sm:$0xf]
        %v1103 = vld [vmem:[#allocation8 + $0x4] sm:$0xf]
        %v1104 = vld [vmem:[#allocation8 + $0x8] sm:$0xf]
        %v1105 = vld [vmem:[#allocation8 + $0xc] sm:$0xf]
        %v1106 = vld [vmem:[#allocation8 + $0x10] sm:$0xf]
        %v1107 = vld [vmem:[#allocation8 + $0x14] sm:$0xf]
        %v1108 = vld [vmem:[#allocation8 + $0x18] sm:$0xf]
        %v1109 = vld [vmem:[#allocation8 + $0x1c] sm:$0xf]
        %v1110 = vld [vmem:[#allocation8 + $0x20] sm:$0xf]
        %v1111 = vld [vmem:[#allocation8 + $0x24] sm:$0xf]
        %v1112 = vld [vmem:[#allocation8 + $0x28] sm:$0xf]
        %v1113 = vld [vmem:[#allocation8 + $0x2c] sm:$0xf]
        %v1114 = vld [vmem:[#allocation8 + $0x30] sm:$0xf]
        %v1115 = vld [vmem:[#allocation8 + $0x34] sm:$0xf]
        %v1116 = vld [vmem:[#allocation8 + $0x38] sm:$0xf]
        %v1117 = vld [vmem:[#allocation8 + $0x3c] sm:$0xf]
        %v1118 = vld [vmem:[#allocation8 + $0x40] sm:$0xf]
        %v1119 = vld [vmem:[#allocation8 + $0x44] sm:$0xf]
        %v1120 = vld [vmem:[#allocation8 + $0x48] sm:$0xf]
        %v1121 = vld [vmem:[#allocation8 + $0x4c] sm:$0xf]
        %v1122 = vld [vmem:[#allocation8 + $0x50] sm:$0xf]
        %v1123 = vld [vmem:[#allocation8 + $0x54] sm:$0xf]
        %v1124 = vld [vmem:[#allocation8 + $0x58] sm:$0xf]
        %v1125 = vld [vmem:[#allocation8 + $0x5c] sm:$0xf]
        %v1126 = vld [vmem:[#allocation8 + $0x60] sm:$0xf]
        %v1127 = vld [vmem:[#allocation8 + $0x64] sm:$0xf]
        %v1128 = vld [vmem:[#allocation8 + $0x68] sm:$0xf]
        %v1129 = vld [vmem:[#allocation8 + $0x6c] sm:$0xf]
        %v1130 = vld [vmem:[#allocation8 + $0x70] sm:$0xf]
        %v1131 = vld [vmem:[#allocation8 + $0x74] sm:$0xf]
        %v1132 = vld [vmem:[#allocation8 + $0x78] sm:$0xf]
        %v1133 = vld [vmem:[#allocation8 + $0x7c] sm:$0xf]
        %v1134 = vld [vmem:[#allocation10] sm:$0x1]
        %v1136 = vlaneseq
        %v1137 = vshrl.u32 %v1136, 7
        %v1138 = vsub.s32 0, %v1137
        %v1139 = vrot.slane %v1134, %v1138
        %v1173 = vunpack.c.l.b16 %v1102
        %v1174 = vunpack.c.l.b16 %v1103
        %v1175 = vunpack.c.l.b16 %v1104
        %v1176 = vunpack.c.l.b16 %v1105
        %v1177 = vunpack.c.l.b16 %v1106
        %v1178 = vunpack.c.l.b16 %v1107
        %v1179 = vunpack.c.l.b16 %v1108
        %v1180 = vunpack.c.l.b16 %v1109
        %v1181 = vunpack.c.l.b16 %v1110
        %v1182 = vunpack.c.l.b16 %v1111
        %v1183 = vunpack.c.l.b16 %v1112
        %v1184 = vunpack.c.l.b16 %v1113
        %v1185 = vunpack.c.l.b16 %v1114
        %v1186 = vunpack.c.l.b16 %v1115
        %v1187 = vunpack.c.l.b16 %v1116
        %v1188 = vunpack.c.l.b16 %v1117
        %v1189 = vunpack.c.l.b16 %v1118
        %v1190 = vunpack.c.l.b16 %v1119
        %v1191 = vunpack.c.l.b16 %v1120
        %v1192 = vunpack.c.l.b16 %v1121
        %v1193 = vunpack.c.l.b16 %v1122
        %v1194 = vunpack.c.l.b16 %v1123
        %v1195 = vunpack.c.l.b16 %v1124
        %v1196 = vunpack.c.l.b16 %v1125
        %v1197 = vunpack.c.l.b16 %v1126
        %v1198 = vunpack.c.l.b16 %v1127
        %v1199 = vunpack.c.l.b16 %v1128
        %v1200 = vunpack.c.l.b16 %v1129
        %v1201 = vunpack.c.l.b16 %v1130
        %v1202 = vunpack.c.l.b16 %v1131
        %v1203 = vunpack.c.l.b16 %v1132
        %v1204 = vunpack.c.l.b16 %v1133
        %v1205 = vpack.c.b16 %v1174, %v1173
        %v1206 = vpack.c.b16 %v1176, %v1175
        %v1207 = vpack.c.b16 %v1178, %v1177
        %v1208 = vpack.c.b16 %v1180, %v1179
        %v1209 = vpack.c.b16 %v1182, %v1181
        %v1210 = vpack.c.b16 %v1184, %v1183
        %v1211 = vpack.c.b16 %v1186, %v1185
        %v1212 = vpack.c.b16 %v1188, %v1187
        %v1213 = vpack.c.b16 %v1190, %v1189
        %v1214 = vpack.c.b16 %v1192, %v1191
        %v1215 = vpack.c.b16 %v1194, %v1193
        %v1216 = vpack.c.b16 %v1196, %v1195
        %v1217 = vpack.c.b16 %v1198, %v1197
        %v1218 = vpack.c.b16 %v1200, %v1199
        %v1219 = vpack.c.b16 %v1202, %v1201
        %v1220 = vpack.c.b16 %v1204, %v1203
        %1237 = vmatprep.subr.bf16.mxu0 0
        %1238 = vmatpush1.bf16.msra.mxu0 %v1212
        %1239 = vmatprep.subr.bf16.mxu0 0
        %1240 = vmatpush1.bf16.msra.mxu0 %v1211
        %1241 = vmatprep.subr.bf16.mxu0 0
        %1242 = vmatpush1.bf16.msra.mxu0 %v1210
        %1243 = vmatprep.subr.bf16.mxu0 0
        %1244 = vmatpush1.bf16.msra.mxu0 %v1209
        %1245 = vmatprep.subr.bf16.mxu0 0
        %1246 = vmatpush1.bf16.msra.mxu0 %v1208
        %1247 = vmatprep.subr.bf16.mxu0 0
        %1248 = vmatpush1.bf16.msra.mxu0 %v1207
        %1249 = vmatprep.subr.bf16.mxu0 0
        %1250 = vmatpush1.bf16.msra.mxu0 %v1206
        %1251 = vmatprep.subr.bf16.mxu0 0
        %1252 = vmatpush1.bf16.msra.mxu0 %v1205
        %1253 = vmatprep.subr.bf16.mxu0 0
        %1254 = vmatpush2.bf16.msra.mxu0 %v1220
        %1255 = vmatprep.subr.bf16.mxu0 0
        %1256 = vmatpush2.bf16.msra.mxu0 %v1219
        %1257 = vmatprep.subr.bf16.mxu0 0
        %1258 = vmatpush2.bf16.msra.mxu0 %v1218
        %1259 = vmatprep.subr.bf16.mxu0 0
        %1260 = vmatpush2.bf16.msra.mxu0 %v1217
        %1261 = vmatprep.subr.bf16.mxu0 0
        %1262 = vmatpush2.bf16.msra.mxu0 %v1216
        %1263 = vmatprep.subr.bf16.mxu0 0
        %1264 = vmatpush2.bf16.msra.mxu0 %v1215
        %1265 = vmatprep.subr.bf16.mxu0 0
        %1266 = vmatpush2.bf16.msra.mxu0 %v1214
        %1267 = vmatprep.subr.bf16.mxu0 0
        %1268 = vmatpush2.bf16.msra.mxu0 %v1213
        %1269 = vmatprep.mubr.bf16.mxu0 %v1101
        %1270 = vmatmul.mubr.bf16.gmra.mxu0 %v1100
        %v1271 = vpop.f32.mrf.mxu0
        %v1272 = vadd.f32 %v1139, %v1271
        %v1273 = vpop.f32.mrf.mxu0
        %v1274 = vpop.f32.mrf.mxu0
        %v1275 = vpop.f32.mrf.mxu0
        %1276 = vdwg.mxu0
        %1277 = vst [vmem:[%s587] sm:$0xff] %v1272
        %v1278 = vpack.c.bf16 %v1272, %v1272
        %v1279 = vld [vmem:[#allocation11] sm:$0xff]
        %v1280 = vld [vmem:[#allocation11 + $0x8] sm:$0xff]
        %v1281 = vld [vmem:[#allocation11 + $0x10] sm:$0xff]
        %v1282 = vld [vmem:[#allocation11 + $0x18] sm:$0xff]
        %v1283 = vld [vmem:[#allocation11 + $0x20] sm:$0xff]
        %v1284 = vld [vmem:[#allocation11 + $0x28] sm:$0xff]
        %v1285 = vld [vmem:[#allocation11 + $0x30] sm:$0xff]
        %v1286 = vld [vmem:[#allocation11 + $0x38] sm:$0xff]
        %v1287 = vld [vmem:[#allocation11 + $0x40] sm:$0xff]
        %v1288 = vld [vmem:[#allocation11 + $0x48] sm:$0xff]
        %v1289 = vld [vmem:[#allocation11 + $0x50] sm:$0xff]
        %v1290 = vld [vmem:[#allocation11 + $0x58] sm:$0xff]
        %v1291 = vld [vmem:[#allocation11 + $0x60] sm:$0xff]
        %v1292 = vld [vmem:[#allocation11 + $0x68] sm:$0xff]
        %v1293 = vld [vmem:[#allocation11 + $0x70] sm:$0xff]
        %v1294 = vld [vmem:[#allocation11 + $0x78] sm:$0xff]
        %v1295 = vld [vmem:[%s8] sm:$0x3]
        %v1297 = vlaneseq
        %v1298 = vshrl.u32 %v1297, 7
        %v1299 = vsub.s32 0, %v1298
        %v1300 = vrot.slane %v1295, %v1299
        %v1301 = vlaneseq
        %v1302 = vshrl.u32 %v1301, 7
        %v1303 = vsub.s32 1, %v1302
        %v1304 = vrot.slane %v1295, %v1303
        %v1323 = vunpack.c.l.b16 %v1279
        %v1324 = vunpack.c.h.b16 %v1279
        %v1325 = vunpack.c.l.b16 %v1280
        %v1326 = vunpack.c.h.b16 %v1280
        %v1327 = vunpack.c.l.b16 %v1281
        %v1328 = vunpack.c.h.b16 %v1281
        %v1329 = vunpack.c.l.b16 %v1282
        %v1330 = vunpack.c.h.b16 %v1282
        %v1331 = vunpack.c.l.b16 %v1283
        %v1332 = vunpack.c.h.b16 %v1283
        %v1333 = vunpack.c.l.b16 %v1284
        %v1334 = vunpack.c.h.b16 %v1284
        %v1335 = vunpack.c.l.b16 %v1285
        %v1336 = vunpack.c.h.b16 %v1285
        %v1337 = vunpack.c.l.b16 %v1286
        %v1338 = vunpack.c.h.b16 %v1286
        %v1339 = vunpack.c.l.b16 %v1287
        %v1340 = vunpack.c.h.b16 %v1287
        %v1341 = vunpack.c.l.b16 %v1288
        %v1342 = vunpack.c.h.b16 %v1288
        %v1343 = vunpack.c.l.b16 %v1289
        %v1344 = vunpack.c.h.b16 %v1289
        %v1345 = vunpack.c.l.b16 %v1290
        %v1346 = vunpack.c.h.b16 %v1290
        %v1347 = vunpack.c.l.b16 %v1291
        %v1348 = vunpack.c.h.b16 %v1291
        %v1349 = vunpack.c.l.b16 %v1292
        %v1350 = vunpack.c.h.b16 %v1292
        %v1351 = vunpack.c.l.b16 %v1293
        %v1352 = vunpack.c.h.b16 %v1293
        %v1353 = vunpack.c.l.b16 %v1294
        %v1354 = vunpack.c.h.b16 %v1294
        %v1355 = vpack.c.b16 %v1325, %v1323
        %v1356 = vpack.c.b16 %v1326, %v1324
        %v1357 = vpack.c.b16 %v1329, %v1327
        %v1358 = vpack.c.b16 %v1330, %v1328
        %v1359 = vpack.c.b16 %v1333, %v1331
        %v1360 = vpack.c.b16 %v1334, %v1332
        %v1361 = vpack.c.b16 %v1337, %v1335
        %v1362 = vpack.c.b16 %v1338, %v1336
        %v1363 = vpack.c.b16 %v1341, %v1339
        %v1364 = vpack.c.b16 %v1342, %v1340
        %v1365 = vpack.c.b16 %v1345, %v1343
        %v1366 = vpack.c.b16 %v1346, %v1344
        %v1367 = vpack.c.b16 %v1349, %v1347
        %v1368 = vpack.c.b16 %v1350, %v1348
        %v1369 = vpack.c.b16 %v1353, %v1351
        %v1370 = vpack.c.b16 %v1354, %v1352
        %1387 = vmatprep.subr.bf16.mxu0 %v1370
        %1388 = vmatpush1.bf16.msra.mxu0 %v1369
        %1389 = vmatprep.subr.bf16.mxu0 %v1368
        %1390 = vmatpush1.bf16.msra.mxu0 %v1367
        %1391 = vmatprep.subr.bf16.mxu0 %v1366
        %1392 = vmatpush1.bf16.msra.mxu0 %v1365
        %1393 = vmatprep.subr.bf16.mxu0 %v1364
        %1394 = vmatpush1.bf16.msra.mxu0 %v1363
        %1395 = vmatprep.subr.bf16.mxu0 %v1362
        %1396 = vmatpush1.bf16.msra.mxu0 %v1361
        %1397 = vmatprep.subr.bf16.mxu0 %v1360
        %1398 = vmatpush1.bf16.msra.mxu0 %v1359
        %1399 = vmatprep.subr.bf16.mxu0 %v1358
        %1400 = vmatpush1.bf16.msra.mxu0 %v1357
        %1401 = vmatprep.subr.bf16.mxu0 %v1356
        %1402 = vmatpush1.bf16.msra.mxu0 %v1355
        %1403 = vmatprep.subr.bf16.mxu0 0
        %1404 = vmatpush2.bf16.msra.mxu0 0
        %1405 = vmatprep.subr.bf16.mxu0 0
        %1406 = vmatpush2.bf16.msra.mxu0 0
        %1407 = vmatprep.subr.bf16.mxu0 0
        %1408 = vmatpush2.bf16.msra.mxu0 0
        %1409 = vmatprep.subr.bf16.mxu0 0
        %1410 = vmatpush2.bf16.msra.mxu0 0
        %1411 = vmatprep.subr.bf16.mxu0 0
        %1412 = vmatpush2.bf16.msra.mxu0 0
        %1413 = vmatprep.subr.bf16.mxu0 0
        %1414 = vmatpush2.bf16.msra.mxu0 0
        %1415 = vmatprep.subr.bf16.mxu0 0
        %1416 = vmatpush2.bf16.msra.mxu0 0
        %1417 = vmatprep.subr.bf16.mxu0 0
        %1418 = vmatpush2.bf16.msra.mxu0 0
        %1419 = vmatprep.mubr.bf16.mxu0 0
        %1420 = vmatmul.mubr.bf16.gmra.mxu0 %v1278
        %v1421 = vpop.f32.mrf.mxu0
        %v1422 = vadd.f32 %v1300, %v1421
        %v1423 = vpop.f32.mrf.mxu0
        %v1424 = vadd.f32 %v1304, %v1423
        %v1425 = vpop.f32.mrf.mxu0
        %v1426 = vpop.f32.mrf.mxu0
        %1427 = vdwg.mxu0
        %v1428 = vtanh.pop %v1422
        %v1429 = vtanh.pop %v1424
        %v1430 = vpack.c.bf16 %v1428, %v1428
        %v1431 = vpack.c.bf16 %v1429, %v1429
        %v1432 = vld [vmem:[#allocation13] sm:$0xff]
        %v1433 = vld [vmem:[#allocation13 + $0x8] sm:$0xff]
        %v1434 = vld [vmem:[#allocation13 + $0x10] sm:$0xff]
        %v1435 = vld [vmem:[#allocation13 + $0x18] sm:$0xff]
        %v1436 = vld [vmem:[#allocation13 + $0x20] sm:$0xff]
        %v1437 = vld [vmem:[#allocation13 + $0x28] sm:$0xff]
        %v1438 = vld [vmem:[#allocation13 + $0x30] sm:$0xff]
        %v1439 = vld [vmem:[#allocation13 + $0x38] sm:$0xff]
        %v1440 = vld [vmem:[#allocation13 + $0x40] sm:$0xff]
        %v1441 = vld [vmem:[#allocation13 + $0x48] sm:$0xff]
        %v1442 = vld [vmem:[#allocation13 + $0x50] sm:$0xff]
        %v1443 = vld [vmem:[#allocation13 + $0x58] sm:$0xff]
        %v1444 = vld [vmem:[#allocation13 + $0x60] sm:$0xff]
        %v1445 = vld [vmem:[#allocation13 + $0x68] sm:$0xff]
        %v1446 = vld [vmem:[#allocation13 + $0x70] sm:$0xff]
        %v1447 = vld [vmem:[#allocation13 + $0x78] sm:$0xff]
        %v1448 = vld [vmem:[#allocation13 + $0x80] sm:$0xff]
        %v1449 = vld [vmem:[#allocation13 + $0x88] sm:$0xff]
        %v1450 = vld [vmem:[#allocation13 + $0x90] sm:$0xff]
        %v1451 = vld [vmem:[#allocation13 + $0x98] sm:$0xff]
        %v1452 = vld [vmem:[#allocation13 + $0xa0] sm:$0xff]
        %v1453 = vld [vmem:[#allocation13 + $0xa8] sm:$0xff]
        %v1454 = vld [vmem:[#allocation13 + $0xb0] sm:$0xff]
        %v1455 = vld [vmem:[#allocation13 + $0xb8] sm:$0xff]
        %v1456 = vld [vmem:[#allocation13 + $0xc0] sm:$0xff]
        %v1457 = vld [vmem:[#allocation13 + $0xc8] sm:$0xff]
        %v1458 = vld [vmem:[#allocation13 + $0xd0] sm:$0xff]
        %v1459 = vld [vmem:[#allocation13 + $0xd8] sm:$0xff]
        %v1460 = vld [vmem:[#allocation13 + $0xe0] sm:$0xff]
        %v1461 = vld [vmem:[#allocation13 + $0xe8] sm:$0xff]
        %v1462 = vld [vmem:[#allocation13 + $0xf0] sm:$0xff]
        %v1463 = vld [vmem:[#allocation13 + $0xf8] sm:$0xff]
        %v1464 = vld [vmem:[%s10] sm:$0x3]
        %v1466 = vlaneseq
        %v1467 = vshrl.u32 %v1466, 7
        %v1468 = vsub.s32 0, %v1467
        %v1469 = vrot.slane %v1464, %v1468
        %v1470 = vlaneseq
        %v1471 = vshrl.u32 %v1470, 7
        %v1472 = vsub.s32 1, %v1471
        %v1473 = vrot.slane %v1464, %v1472
        %v1508 = vunpack.c.l.b16 %v1432
        %v1509 = vunpack.c.h.b16 %v1432
        %v1510 = vunpack.c.l.b16 %v1433
        %v1511 = vunpack.c.h.b16 %v1433
        %v1512 = vunpack.c.l.b16 %v1434
        %v1513 = vunpack.c.h.b16 %v1434
        %v1514 = vunpack.c.l.b16 %v1435
        %v1515 = vunpack.c.h.b16 %v1435
        %v1516 = vunpack.c.l.b16 %v1436
        %v1517 = vunpack.c.h.b16 %v1436
        %v1518 = vunpack.c.l.b16 %v1437
        %v1519 = vunpack.c.h.b16 %v1437
        %v1520 = vunpack.c.l.b16 %v1438
        %v1521 = vunpack.c.h.b16 %v1438
        %v1522 = vunpack.c.l.b16 %v1439
        %v1523 = vunpack.c.h.b16 %v1439
        %v1524 = vunpack.c.l.b16 %v1440
        %v1525 = vunpack.c.h.b16 %v1440
        %v1526 = vunpack.c.l.b16 %v1441
        %v1527 = vunpack.c.h.b16 %v1441
        %v1528 = vunpack.c.l.b16 %v1442
        %v1529 = vunpack.c.h.b16 %v1442
        %v1530 = vunpack.c.l.b16 %v1443
        %v1531 = vunpack.c.h.b16 %v1443
        %v1532 = vunpack.c.l.b16 %v1444
        %v1533 = vunpack.c.h.b16 %v1444
        %v1534 = vunpack.c.l.b16 %v1445
        %v1535 = vunpack.c.h.b16 %v1445
        %v1536 = vunpack.c.l.b16 %v1446
        %v1537 = vunpack.c.h.b16 %v1446
        %v1538 = vunpack.c.l.b16 %v1447
        %v1539 = vunpack.c.h.b16 %v1447
        %v1540 = vunpack.c.l.b16 %v1448
        %v1541 = vunpack.c.h.b16 %v1448
        %v1542 = vunpack.c.l.b16 %v1449
        %v1543 = vunpack.c.h.b16 %v1449
        %v1544 = vunpack.c.l.b16 %v1450
        %v1545 = vunpack.c.h.b16 %v1450
        %v1546 = vunpack.c.l.b16 %v1451
        %v1547 = vunpack.c.h.b16 %v1451
        %v1548 = vunpack.c.l.b16 %v1452
        %v1549 = vunpack.c.h.b16 %v1452
        %v1550 = vunpack.c.l.b16 %v1453
        %v1551 = vunpack.c.h.b16 %v1453
        %v1552 = vunpack.c.l.b16 %v1454
        %v1553 = vunpack.c.h.b16 %v1454
        %v1554 = vunpack.c.l.b16 %v1455
        %v1555 = vunpack.c.h.b16 %v1455
        %v1556 = vunpack.c.l.b16 %v1456
        %v1557 = vunpack.c.h.b16 %v1456
        %v1558 = vunpack.c.l.b16 %v1457
        %v1559 = vunpack.c.h.b16 %v1457
        %v1560 = vunpack.c.l.b16 %v1458
        %v1561 = vunpack.c.h.b16 %v1458
        %v1562 = vunpack.c.l.b16 %v1459
        %v1563 = vunpack.c.h.b16 %v1459
        %v1564 = vunpack.c.l.b16 %v1460
        %v1565 = vunpack.c.h.b16 %v1460
        %v1566 = vunpack.c.l.b16 %v1461
        %v1567 = vunpack.c.h.b16 %v1461
        %v1568 = vunpack.c.l.b16 %v1462
        %v1569 = vunpack.c.h.b16 %v1462
        %v1570 = vunpack.c.l.b16 %v1463
        %v1571 = vunpack.c.h.b16 %v1463
        %v1572 = vpack.c.b16 %v1510, %v1508
        %v1573 = vpack.c.b16 %v1511, %v1509
        %v1574 = vpack.c.b16 %v1514, %v1512
        %v1575 = vpack.c.b16 %v1515, %v1513
        %v1576 = vpack.c.b16 %v1518, %v1516
        %v1577 = vpack.c.b16 %v1519, %v1517
        %v1578 = vpack.c.b16 %v1522, %v1520
        %v1579 = vpack.c.b16 %v1523, %v1521
        %v1580 = vpack.c.b16 %v1526, %v1524
        %v1581 = vpack.c.b16 %v1527, %v1525
        %v1582 = vpack.c.b16 %v1530, %v1528
        %v1583 = vpack.c.b16 %v1531, %v1529
        %v1584 = vpack.c.b16 %v1534, %v1532
        %v1585 = vpack.c.b16 %v1535, %v1533
        %v1586 = vpack.c.b16 %v1538, %v1536
        %v1587 = vpack.c.b16 %v1539, %v1537
        %v1588 = vpack.c.b16 %v1542, %v1540
        %v1589 = vpack.c.b16 %v1543, %v1541
        %v1590 = vpack.c.b16 %v1546, %v1544
        %v1591 = vpack.c.b16 %v1547, %v1545
        %v1592 = vpack.c.b16 %v1550, %v1548
        %v1593 = vpack.c.b16 %v1551, %v1549
        %v1594 = vpack.c.b16 %v1554, %v1552
        %v1595 = vpack.c.b16 %v1555, %v1553
        %v1596 = vpack.c.b16 %v1558, %v1556
        %v1597 = vpack.c.b16 %v1559, %v1557
        %v1598 = vpack.c.b16 %v1562, %v1560
        %v1599 = vpack.c.b16 %v1563, %v1561
        %v1600 = vpack.c.b16 %v1566, %v1564
        %v1601 = vpack.c.b16 %v1567, %v1565
        %v1602 = vpack.c.b16 %v1570, %v1568
        %v1603 = vpack.c.b16 %v1571, %v1569
        %1636 = vmatprep.subr.bf16.mxu0 %v1587
        %1637 = vmatpush1.bf16.msra.mxu0 %v1586
        %1638 = vmatprep.subr.bf16.mxu0 %v1585
        %1639 = vmatpush1.bf16.msra.mxu0 %v1584
        %1640 = vmatprep.subr.bf16.mxu0 %v1583
        %1641 = vmatpush1.bf16.msra.mxu0 %v1582
        %1642 = vmatprep.subr.bf16.mxu0 %v1581
        %1643 = vmatpush1.bf16.msra.mxu0 %v1580
        %1644 = vmatprep.subr.bf16.mxu0 %v1579
        %1645 = vmatpush1.bf16.msra.mxu0 %v1578
        %1646 = vmatprep.subr.bf16.mxu0 %v1577
        %1647 = vmatpush1.bf16.msra.mxu0 %v1576
        %1648 = vmatprep.subr.bf16.mxu0 %v1575
        %1649 = vmatpush1.bf16.msra.mxu0 %v1574
        %1650 = vmatprep.subr.bf16.mxu0 %v1573
        %1651 = vmatpush1.bf16.msra.mxu0 %v1572
        %1652 = vmatprep.subr.bf16.mxu0 %v1603
        %1653 = vmatpush2.bf16.msra.mxu0 %v1602
        %1654 = vmatprep.subr.bf16.mxu0 %v1601
        %1655 = vmatpush2.bf16.msra.mxu0 %v1600
        %1656 = vmatprep.subr.bf16.mxu0 %v1599
        %1657 = vmatpush2.bf16.msra.mxu0 %v1598
        %1658 = vmatprep.subr.bf16.mxu0 %v1597
        %1659 = vmatpush2.bf16.msra.mxu0 %v1596
        %1660 = vmatprep.subr.bf16.mxu0 %v1595
        %1661 = vmatpush2.bf16.msra.mxu0 %v1594
        %1662 = vmatprep.subr.bf16.mxu0 %v1593
        %1663 = vmatpush2.bf16.msra.mxu0 %v1592
        %1664 = vmatprep.subr.bf16.mxu0 %v1591
        %1665 = vmatpush2.bf16.msra.mxu0 %v1590
        %1666 = vmatprep.subr.bf16.mxu0 %v1589
        %1667 = vmatpush2.bf16.msra.mxu0 %v1588
        %1668 = vmatprep.mubr.bf16.mxu0 %v1431
        %1669 = vmatmul.mubr.bf16.gmra.mxu0 %v1430
        %v1670 = vpop.f32.mrf.mxu0
        %v1671 = vadd.f32 %v1469, %v1670
        %v1672 = vpop.f32.mrf.mxu0
        %v1673 = vadd.f32 %v1473, %v1672
        %v1674 = vpop.f32.mrf.mxu0
        %v1675 = vpop.f32.mrf.mxu0
        %1676 = vdwg.mxu0
        %v1677 = vtanh.pop %v1671
        %v1678 = vtanh.pop %v1673
        %v1679 = vpack.c.bf16 %v1677, %v1677
        %v1680 = vpack.c.bf16 %v1678, %v1678
        %v1681 = vld [vmem:[#allocation14] sm:$0xff]
        %v1682 = vld [vmem:[#allocation14 + $0x8] sm:$0xff]
        %v1683 = vld [vmem:[#allocation14 + $0x10] sm:$0xff]
        %v1684 = vld [vmem:[#allocation14 + $0x18] sm:$0xff]
        %v1685 = vld [vmem:[#allocation14 + $0x20] sm:$0xff]
        %v1686 = vld [vmem:[#allocation14 + $0x28] sm:$0xff]
        %v1687 = vld [vmem:[#allocation14 + $0x30] sm:$0xff]
        %v1688 = vld [vmem:[#allocation14 + $0x38] sm:$0xff]
        %v1689 = vld [vmem:[#allocation14 + $0x40] sm:$0xff]
        %v1690 = vld [vmem:[#allocation14 + $0x48] sm:$0xff]
        %v1691 = vld [vmem:[#allocation14 + $0x50] sm:$0xff]
        %v1692 = vld [vmem:[#allocation14 + $0x58] sm:$0xff]
        %v1693 = vld [vmem:[#allocation14 + $0x60] sm:$0xff]
        %v1694 = vld [vmem:[#allocation14 + $0x68] sm:$0xff]
        %v1695 = vld [vmem:[#allocation14 + $0x70] sm:$0xff]
        %v1696 = vld [vmem:[#allocation14 + $0x78] sm:$0xff]
        %v1697 = vld [vmem:[#allocation14 + $0x80] sm:$0xff]
        %v1698 = vld [vmem:[#allocation14 + $0x88] sm:$0xff]
        %v1699 = vld [vmem:[#allocation14 + $0x90] sm:$0xff]
        %v1700 = vld [vmem:[#allocation14 + $0x98] sm:$0xff]
        %v1701 = vld [vmem:[#allocation14 + $0xa0] sm:$0xff]
        %v1702 = vld [vmem:[#allocation14 + $0xa8] sm:$0xff]
        %v1703 = vld [vmem:[#allocation14 + $0xb0] sm:$0xff]
        %v1704 = vld [vmem:[#allocation14 + $0xb8] sm:$0xff]
        %v1705 = vld [vmem:[#allocation14 + $0xc0] sm:$0xff]
        %v1706 = vld [vmem:[#allocation14 + $0xc8] sm:$0xff]
        %v1707 = vld [vmem:[#allocation14 + $0xd0] sm:$0xff]
        %v1708 = vld [vmem:[#allocation14 + $0xd8] sm:$0xff]
        %v1709 = vld [vmem:[#allocation14 + $0xe0] sm:$0xff]
        %v1710 = vld [vmem:[#allocation14 + $0xe8] sm:$0xff]
        %v1711 = vld [vmem:[#allocation14 + $0xf0] sm:$0xff]
        %v1712 = vld [vmem:[#allocation14 + $0xf8] sm:$0xff]
        %v1713 = vld [vmem:[%s12] sm:$0x3]
        %v1715 = vlaneseq
        %v1716 = vshrl.u32 %v1715, 7
        %v1717 = vsub.s32 0, %v1716
        %v1718 = vrot.slane %v1713, %v1717
        %v1719 = vlaneseq
        %v1720 = vshrl.u32 %v1719, 7
        %v1721 = vsub.s32 1, %v1720
        %v1722 = vrot.slane %v1713, %v1721
        %v1757 = vunpack.c.l.b16 %v1681
        %v1758 = vunpack.c.h.b16 %v1681
        %v1759 = vunpack.c.l.b16 %v1682
        %v1760 = vunpack.c.h.b16 %v1682
        %v1761 = vunpack.c.l.b16 %v1683
        %v1762 = vunpack.c.h.b16 %v1683
        %v1763 = vunpack.c.l.b16 %v1684
        %v1764 = vunpack.c.h.b16 %v1684
        %v1765 = vunpack.c.l.b16 %v1685
        %v1766 = vunpack.c.h.b16 %v1685
        %v1767 = vunpack.c.l.b16 %v1686
        %v1768 = vunpack.c.h.b16 %v1686
        %v1769 = vunpack.c.l.b16 %v1687
        %v1770 = vunpack.c.h.b16 %v1687
        %v1771 = vunpack.c.l.b16 %v1688
        %v1772 = vunpack.c.h.b16 %v1688
        %v1773 = vunpack.c.l.b16 %v1689
        %v1774 = vunpack.c.h.b16 %v1689
        %v1775 = vunpack.c.l.b16 %v1690
        %v1776 = vunpack.c.h.b16 %v1690
        %v1777 = vunpack.c.l.b16 %v1691
        %v1778 = vunpack.c.h.b16 %v1691
        %v1779 = vunpack.c.l.b16 %v1692
        %v1780 = vunpack.c.h.b16 %v1692
        %v1781 = vunpack.c.l.b16 %v1693
        %v1782 = vunpack.c.h.b16 %v1693
        %v1783 = vunpack.c.l.b16 %v1694
        %v1784 = vunpack.c.h.b16 %v1694
        %v1785 = vunpack.c.l.b16 %v1695
        %v1786 = vunpack.c.h.b16 %v1695
        %v1787 = vunpack.c.l.b16 %v1696
        %v1788 = vunpack.c.h.b16 %v1696
        %v1789 = vunpack.c.l.b16 %v1697
        %v1790 = vunpack.c.h.b16 %v1697
        %v1791 = vunpack.c.l.b16 %v1698
        %v1792 = vunpack.c.h.b16 %v1698
        %v1793 = vunpack.c.l.b16 %v1699
        %v1794 = vunpack.c.h.b16 %v1699
        %v1795 = vunpack.c.l.b16 %v1700
        %v1796 = vunpack.c.h.b16 %v1700
        %v1797 = vunpack.c.l.b16 %v1701
        %v1798 = vunpack.c.h.b16 %v1701
        %v1799 = vunpack.c.l.b16 %v1702
        %v1800 = vunpack.c.h.b16 %v1702
        %v1801 = vunpack.c.l.b16 %v1703
        %v1802 = vunpack.c.h.b16 %v1703
        %v1803 = vunpack.c.l.b16 %v1704
        %v1804 = vunpack.c.h.b16 %v1704
        %v1805 = vunpack.c.l.b16 %v1705
        %v1806 = vunpack.c.h.b16 %v1705
        %v1807 = vunpack.c.l.b16 %v1706
        %v1808 = vunpack.c.h.b16 %v1706
        %v1809 = vunpack.c.l.b16 %v1707
        %v1810 = vunpack.c.h.b16 %v1707
        %v1811 = vunpack.c.l.b16 %v1708
        %v1812 = vunpack.c.h.b16 %v1708
        %v1813 = vunpack.c.l.b16 %v1709
        %v1814 = vunpack.c.h.b16 %v1709
        %v1815 = vunpack.c.l.b16 %v1710
        %v1816 = vunpack.c.h.b16 %v1710
        %v1817 = vunpack.c.l.b16 %v1711
        %v1818 = vunpack.c.h.b16 %v1711
        %v1819 = vunpack.c.l.b16 %v1712
        %v1820 = vunpack.c.h.b16 %v1712
        %v1821 = vpack.c.b16 %v1759, %v1757
        %v1822 = vpack.c.b16 %v1760, %v1758
        %v1823 = vpack.c.b16 %v1763, %v1761
        %v1824 = vpack.c.b16 %v1764, %v1762
        %v1825 = vpack.c.b16 %v1767, %v1765
        %v1826 = vpack.c.b16 %v1768, %v1766
        %v1827 = vpack.c.b16 %v1771, %v1769
        %v1828 = vpack.c.b16 %v1772, %v1770
        %v1829 = vpack.c.b16 %v1775, %v1773
        %v1830 = vpack.c.b16 %v1776, %v1774
        %v1831 = vpack.c.b16 %v1779, %v1777
        %v1832 = vpack.c.b16 %v1780, %v1778
        %v1833 = vpack.c.b16 %v1783, %v1781
        %v1834 = vpack.c.b16 %v1784, %v1782
        %v1835 = vpack.c.b16 %v1787, %v1785
        %v1836 = vpack.c.b16 %v1788, %v1786
        %v1837 = vpack.c.b16 %v1791, %v1789
        %v1838 = vpack.c.b16 %v1792, %v1790
        %v1839 = vpack.c.b16 %v1795, %v1793
        %v1840 = vpack.c.b16 %v1796, %v1794
        %v1841 = vpack.c.b16 %v1799, %v1797
        %v1842 = vpack.c.b16 %v1800, %v1798
        %v1843 = vpack.c.b16 %v1803, %v1801
        %v1844 = vpack.c.b16 %v1804, %v1802
        %v1845 = vpack.c.b16 %v1807, %v1805
        %v1846 = vpack.c.b16 %v1808, %v1806
        %v1847 = vpack.c.b16 %v1811, %v1809
        %v1848 = vpack.c.b16 %v1812, %v1810
        %v1849 = vpack.c.b16 %v1815, %v1813
        %v1850 = vpack.c.b16 %v1816, %v1814
        %v1851 = vpack.c.b16 %v1819, %v1817
        %v1852 = vpack.c.b16 %v1820, %v1818
        %1885 = vmatprep.subr.bf16.mxu0 %v1836
        %1886 = vmatpush1.bf16.msra.mxu0 %v1835
        %1887 = vmatprep.subr.bf16.mxu0 %v1834
        %1888 = vmatpush1.bf16.msra.mxu0 %v1833
        %1889 = vmatprep.subr.bf16.mxu0 %v1832
        %1890 = vmatpush1.bf16.msra.mxu0 %v1831
        %1891 = vmatprep.subr.bf16.mxu0 %v1830
        %1892 = vmatpush1.bf16.msra.mxu0 %v1829
        %1893 = vmatprep.subr.bf16.mxu0 %v1828
        %1894 = vmatpush1.bf16.msra.mxu0 %v1827
        %1895 = vmatprep.subr.bf16.mxu0 %v1826
        %1896 = vmatpush1.bf16.msra.mxu0 %v1825
        %1897 = vmatprep.subr.bf16.mxu0 %v1824
        %1898 = vmatpush1.bf16.msra.mxu0 %v1823
        %1899 = vmatprep.subr.bf16.mxu0 %v1822
        %1900 = vmatpush1.bf16.msra.mxu0 %v1821
        %1901 = vmatprep.subr.bf16.mxu0 %v1852
        %1902 = vmatpush2.bf16.msra.mxu0 %v1851
        %1903 = vmatprep.subr.bf16.mxu0 %v1850
        %1904 = vmatpush2.bf16.msra.mxu0 %v1849
        %1905 = vmatprep.subr.bf16.mxu0 %v1848
        %1906 = vmatpush2.bf16.msra.mxu0 %v1847
        %1907 = vmatprep.subr.bf16.mxu0 %v1846
        %1908 = vmatpush2.bf16.msra.mxu0 %v1845
        %1909 = vmatprep.subr.bf16.mxu0 %v1844
        %1910 = vmatpush2.bf16.msra.mxu0 %v1843
        %1911 = vmatprep.subr.bf16.mxu0 %v1842
        %1912 = vmatpush2.bf16.msra.mxu0 %v1841
        %1913 = vmatprep.subr.bf16.mxu0 %v1840
        %1914 = vmatpush2.bf16.msra.mxu0 %v1839
        %1915 = vmatprep.subr.bf16.mxu0 %v1838
        %1916 = vmatpush2.bf16.msra.mxu0 %v1837
        %1917 = vmatprep.mubr.bf16.mxu0 %v1680
        %1918 = vmatmul.mubr.bf16.gmra.mxu0 %v1679
        %v1919 = vpop.f32.mrf.mxu0
        %v1920 = vadd.f32 %v1718, %v1919
        %v1921 = vpop.f32.mrf.mxu0
        %v1922 = vadd.f32 %v1722, %v1921
        %v1923 = vpop.f32.mrf.mxu0
        %v1924 = vpop.f32.mrf.mxu0
        %1925 = vdwg.mxu0
        %1926 = vst [vmem:[%s594] sm:$0xff] %v1920
        %1927 = vst [vmem:[%s594 + $0x8] sm:$0xff] %v1922
        %s1928 = sand.u32 %s325, 1
        %s1929 = scalar_lea.sflag [#allocation4], %s1928
        %s1930 = sand.u32 %s325, 1
        %s1931 = smul.addr %s1930, 8
        %s1932 = scalar_lea.vmem [#allocation16], %s1931
        %s1933 = sand.u32 %s351, 1
        %s1934 = scalar_lea.sflag [#allocation18], %s1933
        %s1935 = sand.u32 %s351, 1
        %s1936 = smul.addr %s1935, 16
        %s1937 = scalar_lea.vmem [#allocation17], %s1936
        // Predicated region
        $region105: #{tpu_custom_call.1} parent=71 // pred_check
          %p1938 = pneg %p335
        $region106: #{tpu_custom_call.1} parent=71 // pred_check_branch
          %1940 = sbr.rel (%p1938) target = $region108
        $region107: #{tpu_custom_call.1} parent=71 // pred_region
          %s1942 = ssub.s32 128, 128
          %1943 = vsyncadd %s1929, %s1942
          %s1944 = smul.addr %s39, 128
          %s1945 = scalar_lea.hbm %s13, %s1944
          %s1947 = sshll.u32 %s1932, 4
          %s1948 = int_to_ptr.vmem [resolvable:$true] %s1947
          %1950 = dma.vmem_to_hbm [thread:$0]  %s1948, 128, %s1945, %s1929
        $region108: #{tpu_custom_call.1} parent=71 // pred_fallthru
          _
        // Predicated region
        $region109: #{tpu_custom_call.1} parent=71 // pred_check
          %p1951 = pneg %p361
        $region110: #{tpu_custom_call.1} parent=71 // pred_check_branch
          %1953 = sbr.rel (%p1951) target = $region112
        $region111: #{tpu_custom_call.1} parent=71 // pred_region
          %s1955 = ssub.s32 256, 256
          %1956 = vsyncadd %s1934, %s1955
          %s1957 = smul.addr %s39, 2
          %s1958 = smul.addr %s1957, 128
          %s1959 = scalar_lea.hbm %s14, %s1958
          %s1961 = sshll.u32 %s1937, 4
          %s1962 = int_to_ptr.vmem [resolvable:$true] %s1961
          %1964 = dma.vmem_to_hbm [thread:$0]  %s1962, 256, %s1959, %s1934
        $region112: #{tpu_custom_call.1} parent=71 // pred_fallthru
          _
      $region72: #{tpu_custom_call.1} parent=5 // pred_fallthru
        _
      %p1965 = scmp.le.s32.totalorder 2, %s34
      // Predicated region
      $region113: #{tpu_custom_call.1} parent=5 // pred_check
        %p1966 = pneg %p1965
      $region114: #{tpu_custom_call.1} parent=5 // pred_check_branch
        %1968 = sbr.rel (%p1966) target = $region116
      $region115: #{tpu_custom_call.1} parent=5 // pred_region
        %s1969 = ssub.s32 %s34, 2
        // Predicated region
        $region117: #{tpu_custom_call.1} parent=115 // pred_check
          %p1970 = pneg %p341
        $region118: #{tpu_custom_call.1} parent=115 // pred_check_branch
          %1972 = sbr.rel (%p1970) target = $region120
        $region119: #{tpu_custom_call.1} parent=115 // pred_region
          %s1973 = sand.u32 %s326, 1
          %s1974 = scalar_lea.sflag [#allocation4], %s1973
          %s1975 = sand.u32 %s326, 1
          %s1976 = smul.addr %s1975, 8
          %s1977 = scalar_lea.vmem [#allocation16], %s1976
          %1978 = dma.done %s1974, 128
        $region120: #{tpu_custom_call.1} parent=115 // pred_fallthru
          _
        // Predicated region
        $region121: #{tpu_custom_call.1} parent=115 // pred_check
          %p1979 = pneg %p367
        $region122: #{tpu_custom_call.1} parent=115 // pred_check_branch
          %1981 = sbr.rel (%p1979) target = $region124
        $region123: #{tpu_custom_call.1} parent=115 // pred_region
          %s1982 = sand.u32 %s352, 1
          %s1983 = scalar_lea.sflag [#allocation18], %s1982
          %s1984 = sand.u32 %s352, 1
          %s1985 = smul.addr %s1984, 16
          %s1986 = scalar_lea.vmem [#allocation17], %s1985
          %1987 = dma.done %s1983, 256
        $region124: #{tpu_custom_call.1} parent=115 // pred_fallthru
          _
      $region116: #{tpu_custom_call.1} parent=5 // pred_fallthru
        _
    $region6: #{tpu_custom_call.1} parent=1 // loop_footer
      %s38 = sadd.s32 1, %s34
    $region7: #{tpu_custom_call.1} parent=1 // loop_footer_branch
      %33 = sbr.rel target = $region3
    $region8: #{tpu_custom_call.1} parent=1 // loop_exit
      _
    %1988 = vsyncpa [#allocation3], 1
    %s1989 = scalar_lea.sflag [#allocation3], 1
    %1990 = vsyncpa %s1989, 1
    %1991 = vsyncpa [#allocation6], 1
    %1992 = vsyncpa [#allocation9], 1
    %1993 = vsyncpa [#allocation12], 1
    %1994 = vsyncpa [#allocation15], 1
    %1995 = vsyncpa [#allocation4], 1
    %s1996 = scalar_lea.sflag [#allocation4], 1
    %1997 = vsyncpa %s1996, 1
    %1998 = vsyncpa [#allocation18], 1
    %s1999 = scalar_lea.sflag [#allocation18], 1
    %2000 = vsyncpa %s1999, 1

</llo_original>
